<compile_context>
chip_gen: v7x
topology: tpu7x:2x2x1
jax: 0.10.0
libtpu: 0.0.40
codegen_flags: <defaults>
</compile_context>

<pallas_src>
import math

import jax
import jax.numpy as jnp
import numpy as np
from jax.experimental import pallas as pl
from jax.experimental.pallas import tpu as pltpu

LN_EPS = 1e-5


def _silu(x):
    return x * jax.nn.sigmoid(x)


def _layernorm(x, gamma, beta, eps=LN_EPS):
    mu = jnp.mean(x, axis=-1, keepdims=True)
    var = jnp.mean((x - mu) ** 2, axis=-1, keepdims=True)
    return (x - mu) * jax.lax.rsqrt(var + eps) * gamma + beta


def _round_up(x, m):
    return ((x + m - 1) // m) * m


def _nbytes(shape, dtype):
    return int(np.prod(shape)) * jnp.dtype(dtype).itemsize


def _vmem_limit(block_bytes, scratch_bytes):
    # 2x for double-buffered pipeline blocks + scratch + slack; floor at the
    # smallest generation default (16 MiB), cap below v7x's 64 MiB physical VMEM.
    est = 2 * block_bytes + scratch_bytes + (2 << 20)
    return int(min(max(est, 16 << 20), 56 << 20))


# --------------------------------------------------------------------------- #
# Phase 1: per-node hidden state h                                            #
# --------------------------------------------------------------------------- #
def _make_phase1_kernel(num_rel, hid):
    def kernel(a_rel_ref,            # [R, TM, TK] bf16  per-relation adjacency tile
               x_src_ref,            # [TK, F]     bf16  source-node features
               x_dst_ref,            # [TM, F]     f32   destination-node features
               wl_cat_ref,           # [R*F, H]    f32   vstacked SAGE lin_l weights
               wr_sum_ref,           # [F, H]      f32   sum_r lin_r weights
               bl_sum_ref,           # [1, H]      f32   sum_r lin_l biases
               wlin_ref, blin_ref,   # residual Linear
               ln1g_ref, ln1b_ref, ln2g_ref, ln2b_ref,
               h_ref,                # [TM, Hpad]  bf16  lane-dense output slab
               agg_ref):             # [R*TM, F]   f32   VMEM accumulator scratch
        k = pl.program_id(1)

        @pl.when(k == 0)
        def _():
            agg_ref[...] = jnp.zeros_like(agg_ref)

        # Stream this (dst-tile, src-tile) adjacency block: mean aggregation for
        # all R relations fused into a single MXU call (relation tiles stacked
        # along sublanes). bf16 operands, f32 accumulation. F <= H, so contracting
        # the N^2-sized matmul against F is already the cheaper order.
        r, tm, tk = a_rel_ref.shape
        a_flat = a_rel_ref[...].reshape(r * tm, tk)                # layout no-op
        agg_ref[...] = agg_ref[...] + jnp.dot(
            a_flat, x_src_ref[...], preferred_element_type=jnp.float32)

        @pl.when(k == pl.num_programs(1) - 1)
        def _():
            x_i = x_dst_ref[...]                                   # [TM, F] f32
            agg = agg_ref[...]                                     # [R*TM, F] f32
            # Fused per-relation projection: concat aggregations along K and use
            # the vertically stacked lin_l weights -> one MXU call with K = R*F.
            agg_cat = jnp.concatenate(
                [agg[ri * tm:(ri + 1) * tm] for ri in range(num_rel)], axis=-1)
            conv = (jnp.dot(agg_cat, wl_cat_ref[...],
                            preferred_element_type=jnp.float32)
                    + jnp.dot(x_i, wr_sum_ref[...],
                              preferred_element_type=jnp.float32)
                    + bl_sum_ref[...])
            res_x = jnp.dot(x_i, wlin_ref[...],
                            preferred_element_type=jnp.float32) + blin_ref[...]
            # dropout(p=0.3): identity in eval mode.
            h = _layernorm(_silu(conv), ln1g_ref[...], ln1b_ref[...])
            h = res_x + h
            h = _layernorm(_silu(h), ln2g_ref[...], ln2b_ref[...])
            lane_pad = h_ref.shape[-1] - hid                       # static
            if lane_pad:  # zero-fill to a 128-lane slab -> unmasked stores,
                          # and phase 2's padded weight rows stay inert.
                h = jnp.concatenate(
                    [h, jnp.zeros((h.shape[0], lane_pad), h.dtype)], axis=-1)
            h_ref[...] = h.astype(h_ref.dtype)

    return kernel


# --------------------------------------------------------------------------- #
# Phase 2: final SAGEConv over the combined edge index + ln_out               #
# --------------------------------------------------------------------------- #
def _phase2_kernel(a_ref,            # [TM, TK]       bf16  combined adjacency tile
                   h_src_ref,        # [TK, Hpad]     bf16
                   h_dst_ref,        # [TM, Hpad]     bf16
                   w_cat_ref,        # [2*Hpad, O]    f32   vstack([Wl_f, Wr_f]) padded
                   b_ref,            # [1, O]
                   lng_ref, lnb_ref,
                   out_ref,          # [TM, Opad]     f32   lane-dense output slab
                   acc_ref):         # [TM, Hpad]     f32   VMEM accumulator
    k = pl.program_id(1)

    @pl.when(k == 0)
    def _():
        acc_ref[...] = jnp.zeros_like(acc_ref)

    acc_ref[...] = acc_ref[...] + jnp.dot(
        a_ref[...], h_src_ref[...], preferred_element_type=jnp.float32)

    @pl.when(k == pl.num_programs(1) - 1)
    def _():
        # Fuse the two projection dots: concat([A@h, h]) @ vstack([Wl, Wr]).
        feat = jnp.concatenate(
            [acc_ref[...], h_dst_ref[...].astype(jnp.float32)], axis=-1)
        out = jnp.dot(feat, w_cat_ref[...],
                      preferred_element_type=jnp.float32) + b_ref[...]
        out = _layernorm(out, lng_ref[...], lnb_ref[...])
        lane_pad = out_ref.shape[-1] - out.shape[-1]      # static
        if lane_pad:  # pad to a full 128-lane slab -> unmasked stores
            out = jnp.concatenate(
                [out, jnp.zeros((out.shape[0], lane_pad), out.dtype)], axis=-1)
        out_ref[...] = out


# --------------------------------------------------------------------------- #
# Wrapper                                                                     #
# --------------------------------------------------------------------------- #
def fine_rgcn_pallas(x, a_rel, a_comb, params, *, tm=128, tk=128):
    # Tile sizes: 128 suffices for the demo; for large N raise tm/tk to 256-512
    # (bigger tm also cuts the re-streamed src-feature traffic ~ N^2 * H / tm).
    n, f = x.shape
    r = a_rel.shape[0]
    hid = params["wlin"].shape[1]
    out_dim = params["wlf"].shape[1]

    # Pad node count so both grid axes tile evenly (zero rows/cols are inert).
    n_pad = _round_up(max(n, 1), math.lcm(tm, tk))
    if n_pad != n:
        x = jnp.pad(x, ((0, n_pad - n), (0, 0)))
        a_rel = jnp.pad(a_rel, ((0, 0), (0, n_pad - n), (0, n_pad - n)))
        a_comb = jnp.pad(a_comb, ((0, n_pad - n), (0, n_pad - n)))

    hid_pad = _round_up(hid, 128)     # lane-dense hidden slab (h)
    o_pad = _round_up(out_dim, 128)   # lane-dense output slab

    # dtype plan: adjacency + source features + h in bf16 (bf16 MXU + halved HBM
    # traffic on the dominant N^2-scale streams); projections / LN stay f32.
    a_rel_b = a_rel.astype(jnp.bfloat16)
    a_comb_b = a_comb.astype(jnp.bfloat16)
    x_src = x.astype(jnp.bfloat16)
    x_dst = x.astype(jnp.float32)

    # Weight folding / fusion (identical math, fewer + fatter MXU calls).
    wl_cat = params["wl"].astype(jnp.float32).reshape(r * f, hid)  # vstack over relations
    wr_sum = jnp.sum(params["wr"].astype(jnp.float32), axis=0)     # sum_r x@Wr_r -> x@Wr_sum
    bl_sum = jnp.sum(params["bl"].astype(jnp.float32), axis=0)[None, :]

    # Final SAGEConv weights: rows zero-padded to hid_pad (h's padded lanes are
    # written as exact zeros, so padded rows never contribute), then vstacked.
    def _pad_rows(w):
        return jnp.pad(w.astype(jnp.float32), ((0, hid_pad - hid), (0, 0)))
    w_final = jnp.concatenate([_pad_rows(params["wlf"]), _pad_rows(params["wrf"])], axis=0)

    grid = (n_pad // tm, n_pad // tk)
    sem = ("parallel", "arbitrary")   # dst rows across cores; src reduction axis last

    # ---- phase 1 ------------------------------------------------------------
    blk1 = (_nbytes((r, tm, tk), jnp.bfloat16) + _nbytes((tk, f), jnp.bfloat16)
            + _nbytes((tm, f), jnp.float32) + _nbytes((r * f, hid), jnp.float32)
            + 2 * _nbytes((f, hid), jnp.float32) + 6 * _nbytes((1, hid), jnp.float32)
            + _nbytes((tm, hid_pad), jnp.bfloat16))
    h = pl.pallas_call(
        _make_phase1_kernel(r, hid),
        out_shape=jax.ShapeDtypeStruct((n_pad, hid_pad), jnp.bfloat16),
        grid=grid,
        in_specs=[
            pl.BlockSpec((r, tm, tk), lambda i, k: (0, i, k)),   # A_r tile (bf16)
            pl.BlockSpec((tk, f), lambda i, k: (k, 0)),          # x rows as sources
            pl.BlockSpec((tm, f), lambda i, k: (i, 0)),          # x rows as destinations
            pl.BlockSpec((r * f, hid), lambda i, k: (0, 0)),     # stacked lin_l
            pl.BlockSpec((f, hid), lambda i, k: (0, 0)),         # summed lin_r
            pl.BlockSpec((1, hid), lambda i, k: (0, 0)),         # summed lin_l bias
            pl.BlockSpec((f, hid), lambda i, k: (0, 0)),         # residual Linear W
            pl.BlockSpec((1, hid), lambda i, k: (0, 0)),         # residual Linear b
            pl.BlockSpec((1, hid), lambda i, k: (0, 0)),         # ln1 gamma
            pl.BlockSpec((1, hid), lambda i, k: (0, 0)),         # ln1 beta
            pl.BlockSpec((1, hid), lambda i, k: (0, 0)),         # ln2 gamma
            pl.BlockSpec((1, hid), lambda i, k: (0, 0)),         # ln2 beta
        ],
        out_specs=pl.BlockSpec((tm, hid_pad), lambda i, k: (i, 0)),
        scratch_shapes=[pltpu.VMEM((r * tm, f), jnp.float32)],
        compiler_params=pltpu.CompilerParams(
            dimension_semantics=sem,
            vmem_limit_bytes=_vmem_limit(blk1, _nbytes((r * tm, f), jnp.float32)),
        ),
    )(a_rel_b, x_src, x_dst, wl_cat, wr_sum, bl_sum,
      params["wlin"].astype(jnp.float32), params["blin"].astype(jnp.float32),
      params["ln1g"], params["ln1b"], params["ln2g"], params["ln2b"])

    # ---- phase 2 ------------------------------------------------------------
    blk2 = (_nbytes((tm, tk), jnp.bfloat16) + _nbytes((tk, hid_pad), jnp.bfloat16)
            + _nbytes((tm, hid_pad), jnp.bfloat16)
            + _nbytes((2 * hid_pad, out_dim), jnp.float32)
            + 3 * _nbytes((1, out_dim), jnp.float32) + _nbytes((tm, o_pad), jnp.float32))
    out = pl.pallas_call(
        _phase2_kernel,
        out_shape=jax.ShapeDtypeStruct((n_pad, o_pad), jnp.float32),
        grid=grid,
        in_specs=[
            pl.BlockSpec((tm, tk), lambda i, k: (i, k)),          # combined adjacency
            pl.BlockSpec((tk, hid_pad), lambda i, k: (k, 0)),     # h rows as sources
            pl.BlockSpec((tm, hid_pad), lambda i, k: (i, 0)),     # h rows as destinations
            pl.BlockSpec((2 * hid_pad, out_dim), lambda i, k: (0, 0)),
            pl.BlockSpec((1, out_dim), lambda i, k: (0, 0)),
            pl.BlockSpec((1, out_dim), lambda i, k: (0, 0)),
            pl.BlockSpec((1, out_dim), lambda i, k: (0, 0)),
        ],
        out_specs=pl.BlockSpec((tm, o_pad), lambda i, k: (i, 0)),
        scratch_shapes=[pltpu.VMEM((tm, hid_pad), jnp.float32)],
        compiler_params=pltpu.CompilerParams(
            dimension_semantics=sem,
            vmem_limit_bytes=_vmem_limit(blk2, _nbytes((tm, hid_pad), jnp.float32)),
        ),
    )(a_comb_b, h, h, w_final,
      params["blf"].astype(jnp.float32), params["lnog"], params["lnob"])

    return out[:n, :out_dim]


# --------------------------------------------------------------------------- #
# Plain-JAX reference (pure f32) and graph construction                       #
# --------------------------------------------------------------------------- #
def fine_rgcn_ref(x, a_rel, a_comb, p):
    res_x = x @ p["wlin"] + p["blin"]
    conv_sum = jnp.zeros_like(res_x)
    for r in range(a_rel.shape[0]):
        agg = a_rel[r] @ x
        conv_sum = conv_sum + (agg @ p["wl"][r] + p["bl"][r][None, :] + x @ p["wr"][r])
    h = _silu(conv_sum)
    h = _layernorm(h, p["ln1g"], p["ln1b"])
    h = res_x + h
    h = _silu(h)
    h = _layernorm(h, p["ln2g"], p["ln2b"])
    out = (a_comb @ h) @ p["wlf"] + p["blf"] + h @ p["wrf"]
    return _layernorm(out, p["lnog"], p["lnob"])


def dense_mean_adj(src, dst, n):
    """A_norm[dst, src] = multiplicity / in_degree(dst); zero row if no in-edges."""
    a = jnp.zeros((n, n), jnp.float32).at[dst, src].add(1.0)
    deg = jnp.clip(jnp.sum(a, axis=1, keepdims=True), 1.0, None)
    return a / deg


if __name__ == "__main__":
    # Small, but large enough that the 2-D grid actually tiles: N=256 with
    # 128x128 adjacency blocks -> grid (2, 2). HID=64 / OUT=32 exercise the
    # lane-dense padding paths (64->128, 32->128).
    N, F_IN, HID, OUT, R, E = 256, 32, 64, 32, 2, 1024

    key = jax.random.PRNGKey(0)
    keys = jax.random.split(key, 20)

    # node features (data['patient'].x)
    x = jax.random.normal(keys[0], (N, F_IN), dtype=jnp.float32)

    # per-relation edge indices [2, E] (src, dst), deterministic
    srcs = [jax.random.randint(keys[1 + r], (E,), 0, N) for r in range(R)]
    dsts = [jax.random.randint(keys[3 + r], (E,), 0, N) for r in range(R)]
    a_rel = jnp.stack([dense_mean_adj(srcs[r], dsts[r], N) for r in range(R)], axis=0)
    # combined edge index = concat over relations (duplicates kept, like torch.cat)
    a_comb = dense_mean_adj(jnp.concatenate(srcs), jnp.concatenate(dsts), N)

    def init_w(k, shape, scale=0.1):
        return (scale * jax.random.normal(k, shape)).astype(jnp.float32)

    params = {
        # Linear(num_features, hidden_dim); weights stored [in, out]
        "wlin": init_w(keys[5], (F_IN, HID)),
        "blin": init_w(keys[6], (1, HID)),
        # SAGEConv(num_features, hidden_dim) x R : lin_l (bias) + lin_r (no bias)
        "wl": init_w(keys[7], (R, F_IN, HID)),
        "bl": init_w(keys[8], (R, HID)),
        "wr": init_w(keys[9], (R, F_IN, HID)),
        # conv_final: SAGEConv(hidden_dim, out_dim)
        "wlf": init_w(keys[10], (HID, OUT)),
        "blf": init_w(keys[11], (1, OUT)),
        "wrf": init_w(keys[12], (HID, OUT)),
        # LayerNorms (elementwise affine)
        "ln1g": jnp.ones((1, HID), jnp.float32),
        "ln1b": jnp.zeros((1, HID), jnp.float32),
        "ln2g": jnp.ones((1, HID), jnp.float32),
        "ln2b": jnp.zeros((1, HID), jnp.float32),
        "lnog": jnp.ones((1, OUT), jnp.float32),
        "lnob": jnp.zeros((1, OUT), jnp.float32),
    }

    out = jax.block_until_ready(fine_rgcn_pallas(x, a_rel, a_comb, params))
    ref = jax.block_until_ready(fine_rgcn_ref(x, a_rel, a_comb, params))

    assert out.shape == (N, OUT)
    assert bool(jnp.all(jnp.isfinite(out)))
    # Adjacency / source features / hidden state are fed to the MXU in bf16
    # (f32 accumulation), so allow looser tolerance than a pure-f32 pipeline.
    np.testing.assert_allclose(np.asarray(out), np.asarray(ref), rtol=3e-2, atol=3e-2)

    print("KERNEL_OK")
</pallas_src>

<mosaic_0001>
module attributes {stable_mosaic.version = 11 : i64} {
  func.func @kernel(%arg0: i32, %arg1: i32, %arg2: memref<2x128x128xbf16, #tpu.memory_space<vmem>>, %arg3: memref<128x32xbf16, #tpu.memory_space<vmem>>, %arg4: memref<128x32xf32, #tpu.memory_space<vmem>>, %arg5: memref<64x64xf32, #tpu.memory_space<vmem>>, %arg6: memref<32x64xf32, #tpu.memory_space<vmem>>, %arg7: memref<1x64xf32, #tpu.memory_space<vmem>>, %arg8: memref<32x64xf32, #tpu.memory_space<vmem>>, %arg9: memref<1x64xf32, #tpu.memory_space<vmem>>, %arg10: memref<1x64xf32, #tpu.memory_space<vmem>>, %arg11: memref<1x64xf32, #tpu.memory_space<vmem>>, %arg12: memref<1x64xf32, #tpu.memory_space<vmem>>, %arg13: memref<1x64xf32, #tpu.memory_space<vmem>>, %arg14: memref<128x128xbf16, #tpu.memory_space<vmem>>, %arg15: memref<256x32xf32, #tpu.memory_space<vmem>>) attributes {dimension_semantics = [#tpu.dimension_semantics<parallel>, #tpu.dimension_semantics<arbitrary>], iteration_bounds = array<i64: 2, 2>, scalar_prefetch = 0 : i64, scratch_operands = 1 : i64, tpu.core_type = #tpu.core_type<tc>, window_params = [{transform_indices = @transform_0, window_bounds = array<i64: 2, 128, 128>}, {transform_indices = @transform_1, window_bounds = array<i64: 128, 32>}, {transform_indices = @transform_2, window_bounds = array<i64: 128, 32>}, {pipeline_mode = #tpu.pipeline_mode<synchronous>, transform_indices = @transform_3, window_bounds = array<i64: 64, 64>}, {pipeline_mode = #tpu.pipeline_mode<synchronous>, transform_indices = @transform_4, window_bounds = array<i64: 32, 64>}, {pipeline_mode = #tpu.pipeline_mode<synchronous>, transform_indices = @transform_5, window_bounds = array<i64: 1, 64>}, {pipeline_mode = #tpu.pipeline_mode<synchronous>, transform_indices = @transform_6, window_bounds = array<i64: 32, 64>}, {pipeline_mode = #tpu.pipeline_mode<synchronous>, transform_indices = @transform_7, window_bounds = array<i64: 1, 64>}, {pipeline_mode = #tpu.pipeline_mode<synchronous>, transform_indices = @transform_8, window_bounds = array<i64: 1, 64>}, {pipeline_mode = #tpu.pipeline_mode<synchronous>, transform_indices = @transform_9, window_bounds = array<i64: 1, 64>}, {pipeline_mode = #tpu.pipeline_mode<synchronous>, transform_indices = @transform_10, window_bounds = array<i64: 1, 64>}, {pipeline_mode = #tpu.pipeline_mode<synchronous>, transform_indices = @transform_11, window_bounds = array<i64: 1, 64>}, {transform_indices = @transform_12, window_bounds = array<i64: 128, 128>}]} {
    %c0_i32 = arith.constant 0 : i32
    %0 = arith.cmpi eq, %arg1, %c0_i32 : i32
    %1 = arith.extui %0 : i1 to i32
    %c0_i32_0 = arith.constant 0 : i32
    %2 = arith.cmpi ne, %1, %c0_i32_0 : i32
    scf.if %2 {
      %cst_10 = arith.constant 0.000000e+00 : f32
      %13 = vector.broadcast %cst_10 : f32 to vector<256x32xf32>
      %c0_11 = arith.constant 0 : index
      %c0_12 = arith.constant 0 : index
      %14 = vector.load %arg15[%c0_11, %c0_12] : memref<256x32xf32, #tpu.memory_space<vmem>>, vector<256x32xf32>
      tpu.vector_store %arg15[%c0_11, %c0_12], %13 {strides = array<i32>} : memref<256x32xf32, #tpu.memory_space<vmem>>, vector<256x32xf32>,
    } else {
    }
    %c0 = arith.constant 0 : index
    %c0_1 = arith.constant 0 : index
    %c0_2 = arith.constant 0 : index
    %3 = vector.load %arg2[%c0, %c0_1, %c0_2] : memref<2x128x128xbf16, #tpu.memory_space<vmem>>, vector<2x128x128xbf16>
    %4 = vector.shape_cast %3 : vector<2x128x128xbf16> to vector<256x128xbf16>
    %c0_3 = arith.constant 0 : index
    %c0_4 = arith.constant 0 : index
    %5 = vector.load %arg15[%c0_3, %c0_4] : memref<256x32xf32, #tpu.memory_space<vmem>>, vector<256x32xf32>
    %c0_5 = arith.constant 0 : index
    %c0_6 = arith.constant 0 : index
    %6 = vector.load %arg3[%c0_5, %c0_6] : memref<128x32xbf16, #tpu.memory_space<vmem>>, vector<128x32xbf16>
    %cst = arith.constant dense<0.000000e+00> : vector<256x32xf32>
    %7 = tpu.matmul %4, %6, %cst {dimension_numbers = #tpu.dot_dimension_numbers<[1], [0], [0], [1], [0, 0, 1, 1], [], []>} : vector<256x128xbf16>, vector<128x32xbf16>, vector<256x32xf32> -> vector<256x32xf32>
    %8 = arith.addf %5, %7 : vector<256x32xf32>
    %c0_7 = arith.constant 0 : index
    %c0_8 = arith.constant 0 : index
    %9 = vector.load %arg15[%c0_7, %c0_8] : memref<256x32xf32, #tpu.memory_space<vmem>>, vector<256x32xf32>
    tpu.vector_store %arg15[%c0_7, %c0_8], %8 {strides = array<i32>} : memref<256x32xf32, #tpu.memory_space<vmem>>, vector<256x32xf32>,
    %c1_i32 = arith.constant 1 : i32
    %10 = arith.cmpi eq, %arg1, %c1_i32 : i32
    %11 = arith.extui %10 : i1 to i32
    %c0_i32_9 = arith.constant 0 : i32
    %12 = arith.cmpi ne, %11, %c0_i32_9 : i32
    scf.if %12 {
      %c0_10 = arith.constant 0 : index
      %c0_11 = arith.constant 0 : index
      %13 = vector.load %arg4[%c0_10, %c0_11] : memref<128x32xf32, #tpu.memory_space<vmem>>, vector<128x32xf32>
      %c0_12 = arith.constant 0 : index
      %c0_13 = arith.constant 0 : index
      %14 = vector.load %arg15[%c0_12, %c0_13] : memref<256x32xf32, #tpu.memory_space<vmem>>, vector<256x32xf32>
      %15 = vector.extract_strided_slice %14 {offsets = [0, 0], sizes = [128, 32], strides = [1, 1]} : vector<256x32xf32> to vector<128x32xf32>
      %16 = vector.extract_strided_slice %14 {offsets = [128, 0], sizes = [128, 32], strides = [1, 1]} : vector<256x32xf32> to vector<128x32xf32>
      %17 = tpu.concatenate %15, %16 in 1 : vector<128x32xf32>, vector<128x32xf32> -> vector<128x64xf32>
      %c0_14 = arith.constant 0 : index
      %c0_15 = arith.constant 0 : index
      %18 = vector.load %arg5[%c0_14, %c0_15] : memref<64x64xf32, #tpu.memory_space<vmem>>, vector<64x64xf32>
      %cst_16 = arith.constant dense<0.000000e+00> : vector<128x64xf32>
      %19 = tpu.matmul %17, %18, %cst_16 {dimension_numbers = #tpu.dot_dimension_numbers<[1], [0], [0], [1], [0, 0, 1, 1], [], []>} : vector<128x64xf32>, vector<64x64xf32>, vector<128x64xf32> -> vector<128x64xf32>
      %c0_17 = arith.constant 0 : index
      %c0_18 = arith.constant 0 : index
      %20 = vector.load %arg6[%c0_17, %c0_18] : memref<32x64xf32, #tpu.memory_space<vmem>>, vector<32x64xf32>
      %cst_19 = arith.constant dense<0.000000e+00> : vector<128x64xf32>
      %21 = tpu.matmul %13, %20, %cst_19 {dimension_numbers = #tpu.dot_dimension_numbers<[1], [0], [0], [1], [0, 0, 1, 1], [], []>} : vector<128x32xf32>, vector<32x64xf32>, vector<128x64xf32> -> vector<128x64xf32>
      %22 = arith.addf %19, %21 : vector<128x64xf32>
      %c0_20 = arith.constant 0 : index
      %c0_21 = arith.constant 0 : index
      %23 = vector.load %arg7[%c0_20, %c0_21] : memref<1x64xf32, #tpu.memory_space<vmem>>, vector<1x64xf32>
      %24 = vector.broadcast %23 : vector<1x64xf32> to vector<128x64xf32>
      %25 = arith.addf %22, %24 : vector<128x64xf32>
      %c0_22 = arith.constant 0 : index
      %c0_23 = arith.constant 0 : index
      %26 = vector.load %arg8[%c0_22, %c0_23] : memref<32x64xf32, #tpu.memory_space<vmem>>, vector<32x64xf32>
      %cst_24 = arith.constant dense<0.000000e+00> : vector<128x64xf32>
      %27 = tpu.matmul %13, %26, %cst_24 {dimension_numbers = #tpu.dot_dimension_numbers<[1], [0], [0], [1], [0, 0, 1, 1], [], []>} : vector<128x32xf32>, vector<32x64xf32>, vector<128x64xf32> -> vector<128x64xf32>
      %c0_25 = arith.constant 0 : index
      %c0_26 = arith.constant 0 : index
      %28 = vector.load %arg9[%c0_25, %c0_26] : memref<1x64xf32, #tpu.memory_space<vmem>>, vector<1x64xf32>
      %29 = vector.broadcast %28 : vector<1x64xf32> to vector<128x64xf32>
      %30 = arith.addf %27, %29 : vector<128x64xf32>
      %31 = arith.negf %25 : vector<128x64xf32>
      %32 = math.exp %31 : vector<128x64xf32>
      %cst_27 = arith.constant 1.000000e+00 : f32
      %33 = vector.broadcast %cst_27 : f32 to vector<128x64xf32>
      %34 = arith.addf %33, %32 : vector<128x64xf32>
      %35 = arith.divf %33, %34 : vector<128x64xf32>
      %36 = arith.mulf %25, %35 : vector<128x64xf32>
      %c0_28 = arith.constant 0 : index
      %c0_29 = arith.constant 0 : index
      %37 = vector.load %arg10[%c0_28, %c0_29] : memref<1x64xf32, #tpu.memory_space<vmem>>, vector<1x64xf32>
      %c0_30 = arith.constant 0 : index
      %c0_31 = arith.constant 0 : index
      %38 = vector.load %arg11[%c0_30, %c0_31] : memref<1x64xf32, #tpu.memory_space<vmem>>, vector<1x64xf32>
      %cst_32 = arith.constant dense<0.000000e+00> : vector<128xf32>
      %39 = vector.multi_reduction <add>, %36, %cst_32 [1] : vector<128x64xf32> to vector<128xf32>
      %40 = vector.shape_cast %39 : vector<128xf32> to vector<128x1xf32>
      %cst_33 = arith.constant 6.400000e+01 : f32
      %41 = vector.broadcast %cst_33 : f32 to vector<128x1xf32>
      %42 = arith.divf %40, %41 : vector<128x1xf32>
      %43 = vector.broadcast %42 : vector<128x1xf32> to vector<128x64xf32>
      %44 = arith.subf %36, %43 : vector<128x64xf32>
      %45 = arith.mulf %44, %44 : vector<128x64xf32>
      %cst_34 = arith.constant dense<0.000000e+00> : vector<128xf32>
      %46 = vector.multi_reduction <add>, %45, %cst_34 [1] : vector<128x64xf32> to vector<128xf32>
      %47 = vector.shape_cast %46 : vector<128xf32> to vector<128x1xf32>
      %cst_35 = arith.constant 6.400000e+01 : f32
      %48 = vector.broadcast %cst_35 : f32 to vector<128x1xf32>
      %49 = arith.divf %47, %48 : vector<128x1xf32>
      %50 = vector.broadcast %42 : vector<128x1xf32> to vector<128x64xf32>
      %51 = arith.subf %36, %50 : vector<128x64xf32>
      %cst_36 = arith.constant 9.99999974E-6 : f32
      %52 = vector.broadcast %cst_36 : f32 to vector<128x1xf32>
      %53 = arith.addf %49, %52 : vector<128x1xf32>
      %54 = math.rsqrt %53 : vector<128x1xf32>
      %55 = vector.broadcast %54 : vector<128x1xf32> to vector<128x64xf32>
      %56 = arith.mulf %51, %55 : vector<128x64xf32>
      %57 = vector.broadcast %37 : vector<1x64xf32> to vector<128x64xf32>
      %58 = arith.mulf %56, %57 : vector<128x64xf32>
      %59 = vector.broadcast %38 : vector<1x64xf32> to vector<128x64xf32>
      %60 = arith.addf %58, %59 : vector<128x64xf32>
      %61 = arith.addf %30, %60 : vector<128x64xf32>
      %62 = arith.negf %61 : vector<128x64xf32>
      %63 = math.exp %62 : vector<128x64xf32>
      %cst_37 = arith.constant 1.000000e+00 : f32
      %64 = vector.broadcast %cst_37 : f32 to vector<128x64xf32>
      %65 = arith.addf %64, %63 : vector<128x64xf32>
      %66 = arith.divf %64, %65 : vector<128x64xf32>
      %67 = arith.mulf %61, %66 : vector<128x64xf32>
      %c0_38 = arith.constant 0 : index
      %c0_39 = arith.constant 0 : index
      %68 = vector.load %arg12[%c0_38, %c0_39] : memref<1x64xf32, #tpu.memory_space<vmem>>, vector<1x64xf32>
      %c0_40 = arith.constant 0 : index
      %c0_41 = arith.constant 0 : index
      %69 = vector.load %arg13[%c0_40, %c0_41] : memref<1x64xf32, #tpu.memory_space<vmem>>, vector<1x64xf32>
      %cst_42 = arith.constant dense<0.000000e+00> : vector<128xf32>
      %70 = vector.multi_reduction <add>, %67, %cst_42 [1] : vector<128x64xf32> to vector<128xf32>
      %71 = vector.shape_cast %70 : vector<128xf32> to vector<128x1xf32>
      %cst_43 = arith.constant 6.400000e+01 : f32
      %72 = vector.broadcast %cst_43 : f32 to vector<128x1xf32>
      %73 = arith.divf %71, %72 : vector<128x1xf32>
      %74 = vector.broadcast %73 : vector<128x1xf32> to vector<128x64xf32>
      %75 = arith.subf %67, %74 : vector<128x64xf32>
      %76 = arith.mulf %75, %75 : vector<128x64xf32>
      %cst_44 = arith.constant dense<0.000000e+00> : vector<128xf32>
      %77 = vector.multi_reduction <add>, %76, %cst_44 [1] : vector<128x64xf32> to vector<128xf32>
      %78 = vector.shape_cast %77 : vector<128xf32> to vector<128x1xf32>
      %cst_45 = arith.constant 6.400000e+01 : f32
      %79 = vector.broadcast %cst_45 : f32 to vector<128x1xf32>
      %80 = arith.divf %78, %79 : vector<128x1xf32>
      %81 = vector.broadcast %73 : vector<128x1xf32> to vector<128x64xf32>
      %82 = arith.subf %67, %81 : vector<128x64xf32>
      %cst_46 = arith.constant 9.99999974E-6 : f32
      %83 = vector.broadcast %cst_46 : f32 to vector<128x1xf32>
      %84 = arith.addf %80, %83 : vector<128x1xf32>
      %85 = math.rsqrt %84 : vector<128x1xf32>
      %86 = vector.broadcast %85 : vector<128x1xf32> to vector<128x64xf32>
      %87 = arith.mulf %82, %86 : vector<128x64xf32>
      %88 = vector.broadcast %68 : vector<1x64xf32> to vector<128x64xf32>
      %89 = arith.mulf %87, %88 : vector<128x64xf32>
      %90 = vector.broadcast %69 : vector<1x64xf32> to vector<128x64xf32>
      %91 = arith.addf %89, %90 : vector<128x64xf32>
      %cst_47 = arith.constant 0.000000e+00 : f32
      %92 = vector.broadcast %cst_47 : f32 to vector<128x64xf32>
      %93 = tpu.concatenate %91, %92 in 1 : vector<128x64xf32>, vector<128x64xf32> -> vector<128x128xf32>
      %94 = arith.truncf %93 : vector<128x128xf32> to vector<128x128xbf16>
      %c0_48 = arith.constant 0 : index
      %c0_49 = arith.constant 0 : index
      %95 = vector.load %arg14[%c0_48, %c0_49] : memref<128x128xbf16, #tpu.memory_space<vmem>>, vector<128x128xbf16>
      tpu.vector_store %arg14[%c0_48, %c0_49], %94 {strides = array<i32>} : memref<128x128xbf16, #tpu.memory_space<vmem>>, vector<128x128xbf16>,
    } else {
    }
    return
  }
  func.func @transform_0(%arg0: i32, %arg1: i32) -> (i32, i32, i32) {
    %c0_i32 = arith.constant 0 : i32
    %c0_i32_0 = arith.constant 0 : i32
    return %c0_i32, %arg0, %arg1 : i32, i32, i32
  }
  func.func @transform_1(%arg0: i32, %arg1: i32) -> (i32, i32) {
    %c0_i32 = arith.constant 0 : i32
    %c0_i32_0 = arith.constant 0 : i32
    return %arg1, %c0_i32 : i32, i32
  }
  func.func @transform_2(%arg0: i32, %arg1: i32) -> (i32, i32) {
    %c0_i32 = arith.constant 0 : i32
    %c0_i32_0 = arith.constant 0 : i32
    return %arg0, %c0_i32 : i32, i32
  }
  func.func @transform_3(%arg0: i32, %arg1: i32) -> (i32, i32) {
    %c0_i32 = arith.constant 0 : i32
    %c0_i32_0 = arith.constant 0 : i32
    %c0_i32_1 = arith.constant 0 : i32
    return %c0_i32, %c0_i32_0 : i32, i32
  }
  func.func @transform_4(%arg0: i32, %arg1: i32) -> (i32, i32) {
    %c0_i32 = arith.constant 0 : i32
    %c0_i32_0 = arith.constant 0 : i32
    %c0_i32_1 = arith.constant 0 : i32
    return %c0_i32, %c0_i32_0 : i32, i32
  }
  func.func @transform_5(%arg0: i32, %arg1: i32) -> (i32, i32) {
    %c0_i32 = arith.constant 0 : i32
    %c0_i32_0 = arith.constant 0 : i32
    %c0_i32_1 = arith.constant 0 : i32
    return %c0_i32, %c0_i32_0 : i32, i32
  }
  func.func @transform_6(%arg0: i32, %arg1: i32) -> (i32, i32) {
    %c0_i32 = arith.constant 0 : i32
    %c0_i32_0 = arith.constant 0 : i32
    %c0_i32_1 = arith.constant 0 : i32
    return %c0_i32, %c0_i32_0 : i32, i32
  }
  func.func @transform_7(%arg0: i32, %arg1: i32) -> (i32, i32) {
    %c0_i32 = arith.constant 0 : i32
    %c0_i32_0 = arith.constant 0 : i32
    %c0_i32_1 = arith.constant 0 : i32
    return %c0_i32, %c0_i32_0 : i32, i32
  }
  func.func @transform_8(%arg0: i32, %arg1: i32) -> (i32, i32) {
    %c0_i32 = arith.constant 0 : i32
    %c0_i32_0 = arith.constant 0 : i32
    %c0_i32_1 = arith.constant 0 : i32
    return %c0_i32, %c0_i32_0 : i32, i32
  }
  func.func @transform_9(%arg0: i32, %arg1: i32) -> (i32, i32) {
    %c0_i32 = arith.constant 0 : i32
    %c0_i32_0 = arith.constant 0 : i32
    %c0_i32_1 = arith.constant 0 : i32
    return %c0_i32, %c0_i32_0 : i32, i32
  }
  func.func @transform_10(%arg0: i32, %arg1: i32) -> (i32, i32) {
    %c0_i32 = arith.constant 0 : i32
    %c0_i32_0 = arith.constant 0 : i32
    %c0_i32_1 = arith.constant 0 : i32
    return %c0_i32, %c0_i32_0 : i32, i32
  }
  func.func @transform_11(%arg0: i32, %arg1: i32) -> (i32, i32) {
    %c0_i32 = arith.constant 0 : i32
    %c0_i32_0 = arith.constant 0 : i32
    %c0_i32_1 = arith.constant 0 : i32
    return %c0_i32, %c0_i32_0 : i32, i32
  }
  func.func @transform_12(%arg0: i32, %arg1: i32) -> (i32, i32) {
    %c0_i32 = arith.constant 0 : i32
    %c0_i32_0 = arith.constant 0 : i32
    return %arg0, %c0_i32 : i32, i32
  }
}

</mosaic_0001>

<llo_original>
// kernel: tpu_custom_call.1
$region0: #{tpu_custom_call.1}
  #allocation0 [shape = 'u32[]', space=smem, size = 0x4, offset = 0x4, fixed_abs, tag = 'smem constant byte address 0x4 - core index']
  #allocation1 [shape = 'u32[144,128]{1,0:T(1,128)}', space=vmem, size = 0x12000, scoped, tag = 'internal scratch']
  #allocation2 [shape = 'f32[256,32]{1,0:T(8,128)}', space=vmem, size = 0x20000, scoped, tag = 'scratch operand']
  #allocation7 [shape = 's32[]', space=sflag, size = 0x4, offset = 0, fixed_abs, tag = 'sflag constant byte address 0x0 - dummy sync flag']
  %s0 = inlined_call_operand.hbm [shape: bf16[2,256,256], index: 0, kind: input, shape index: {}]
  %s1 = inlined_call_operand.vmem [shape: bf16[256,32], index: 1, kind: input, shape index: {}]
  %s2 = inlined_call_operand.vmem [shape: f32[256,32], index: 2, kind: input, shape index: {}]
  %s3 = inlined_call_operand.vmem [shape: f32[64,64], index: 3, kind: input, shape index: {}]
  %s4 = inlined_call_operand.vmem [shape: f32[32,64], index: 4, kind: input, shape index: {}]
  %s5 = inlined_call_operand.vmem [shape: f32[1,64], index: 5, kind: input, shape index: {}]
  %s6 = inlined_call_operand.vmem [shape: f32[32,64], index: 6, kind: input, shape index: {}]
  %s7 = inlined_call_operand.vmem [shape: f32[1,64], index: 7, kind: input, shape index: {}]
  %s8 = inlined_call_operand.vmem [shape: f32[1,64], index: 8, kind: input, shape index: {}]
  %s9 = inlined_call_operand.vmem [shape: f32[1,64], index: 9, kind: input, shape index: {}]
  %s10 = inlined_call_operand.vmem [shape: f32[1,64], index: 10, kind: input, shape index: {}]
  %s11 = inlined_call_operand.vmem [shape: f32[1,64], index: 11, kind: input, shape index: {}]
  %s12 = inlined_call_operand.hbm [shape: bf16[256,128], index: 12, kind: output, shape index: {}]
  %s13 = sld [smem:[#allocation0]]
  $region93: #{tpu_custom_call.1} parent=0
    _
  %s15 = ssub.s32 1, %s13
  %s16 = scalar_select 0, %s15, %s13
  $region1: #{tpu_custom_call.1} parent=0
    #allocation3 [shape = 'u8[131072]{0}', space=vmem, size = 0x20000, scoped, tag = 'input window, operand 0']
    #allocation4 [shape = 's32[2]{0}', space=sflag, size = 0x8, scoped, tag = 'scoped memory for tpu_custom_call.1']
    #allocation5 [shape = 's32[2]{0}', space=sflag, size = 0x8, scoped, tag = 'scoped memory for tpu_custom_call.1']
    #allocation6 [shape = 'u8[65536]{0}', space=vmem, size = 0x10000, scoped, tag = 'output window, operand 0']
    %17 = vsyncpa [#allocation4], 0
    %s18 = scalar_lea.sflag [#allocation4], 1
    %19 = vsyncpa %s18, 0
    %20 = vsyncpa [#allocation5], 0
    %s21 = scalar_lea.sflag [#allocation5], 1
    %22 = vsyncpa %s21, 0
    loop: start=0, step=1, limit=6
    $region2: #{tpu_custom_call.1} parent=1 // loop_pre_header
      _
    $region3: #{tpu_custom_call.1} parent=1 // loop_header
      %s24 = sphi 0, %s28
      %p25 = scmp.ge.s32.totalorder %s24, 6
      %s31 = sphi 0, %s43
      %s32 = sphi 0, %s39
      %s33 = sphi 0, %s31
      %s34 = sphi 0, %s32
      %s35 = sphi 0, %s33
      %s36 = sphi 0, %s34
      %s48 = sphi 0, %s50
      %s51 = sphi 0, %s48
      %s52 = sphi 0, %s51
      %s68 = sphi 0, %s52
      %s74 = sphi 0, %s76
      %s77 = sphi 0, %s74
      %s78 = sphi 0, %s77
      %s94 = sphi 0, %s78
      %s100 = sphi 0, %s102
      %s103 = sphi 0, %s100
      %s104 = sphi 0, %s103
      %s120 = sphi 0, %s104
      %s124 = sphi 0, %s124
      %s126 = sphi 0, %s124
      %s127 = sphi 0, %s126
      %s141 = sphi 0, %s127
      %s145 = sphi 0, %s145
      %s147 = sphi 0, %s145
      %s148 = sphi 0, %s147
      %s162 = sphi 0, %s148
      %s166 = sphi 0, %s166
      %s168 = sphi 0, %s166
      %s169 = sphi 0, %s168
      %s183 = sphi 0, %s169
      %s187 = sphi 0, %s187
      %s189 = sphi 0, %s187
      %s190 = sphi 0, %s189
      %s204 = sphi 0, %s190
      %s208 = sphi 0, %s208
      %s210 = sphi 0, %s208
      %s211 = sphi 0, %s210
      %s225 = sphi 0, %s211
      %s229 = sphi 0, %s229
      %s231 = sphi 0, %s229
      %s232 = sphi 0, %s231
      %s246 = sphi 0, %s232
      %s250 = sphi 0, %s250
      %s252 = sphi 0, %s250
      %s253 = sphi 0, %s252
      %s267 = sphi 0, %s253
      %s271 = sphi 0, %s271
      %s273 = sphi 0, %s271
      %s274 = sphi 0, %s273
      %s288 = sphi 0, %s274
      %s292 = sphi 0, %s292
      %s294 = sphi 0, %s292
      %s295 = sphi 0, %s294
      %s309 = sphi 0, %s295
      %s315 = sphi 0, %s317
      %s318 = sphi 0, %s315
      %s319 = sphi 0, %s318
      %s335 = sphi 0, %s319
    $region4: #{tpu_custom_call.1} parent=1 // loop_header_branch
      %27 = sbr.rel (%p25) target = $region8
    $region5: #{tpu_custom_call.1} parent=1 // loop_body
      %s29 = ssub.s32 %s24, 1
      %s30 = ssub.s32 %s24, 2
      %s37 = sadd.s32 1, %s32
      %p38 = scmp.ge.s32.totalorder %s37, 2
      %s39 = scalar_select %p38, 0, %s37
      %s40 = sadd.s32 1, %s31
      %s41 = scalar_select %p38, %s40, %s31
      %p42 = scmp.ge.s32.totalorder %s41, 2
      %s43 = scalar_select %p42, 0, %s41
      %s44 = ssub.s32 %s31, %s43
      %s45 = ssub.s32 %s32, %s39
      %s46 = sor.u32 %s44, %s45
      %p47 = scmp.eq.s32.totalorder %s46, 0
      %s49 = sadd.s32 %s48, 1
      %s50 = scalar_select %p47, %s48, %s49
      %p53 = pneg %p47
      %p54 = scmp.eq.s32.totalorder %s24, 3
      %p55 = por %p53, %p54
      %p56 = scmp.ne.s32.totalorder %s48, %s51
      %p57 = scmp.eq.s32.totalorder %s24, 0
      %p58 = por %p56, %p57
      %p59 = scmp.ne.s32.totalorder %s48, %s51
      %p60 = scmp.eq.s32.totalorder %s29, 3
      %p61 = por %p59, %p60
      %p62 = scmp.ne.s32.totalorder %s51, %s52
      %p63 = scmp.eq.s32.totalorder %s29, 0
      %p64 = por %p62, %p63
      %p65 = scmp.ne.s32.totalorder %s51, %s52
      %p66 = scmp.eq.s32.totalorder %s30, 3
      %p67 = por %p65, %p66
      %p69 = scmp.ne.s32.totalorder %s52, %s68
      %p70 = scmp.eq.s32.totalorder %s30, 0
      %p71 = por %p69, %p70
      %s72 = ssub.s32 %s32, %s39
      %p73 = scmp.eq.s32.totalorder %s72, 0
      %s75 = sadd.s32 %s74, 1
      %s76 = scalar_select %p73, %s74, %s75
      %p79 = pneg %p73
      %p80 = scmp.eq.s32.totalorder %s24, 3
      %p81 = por %p79, %p80
      %p82 = scmp.ne.s32.totalorder %s74, %s77
      %p83 = scmp.eq.s32.totalorder %s24, 0
      %p84 = por %p82, %p83
      %p85 = scmp.ne.s32.totalorder %s74, %s77
      %p86 = scmp.eq.s32.totalorder %s29, 3
      %p87 = por %p85, %p86
      %p88 = scmp.ne.s32.totalorder %s77, %s78
      %p89 = scmp.eq.s32.totalorder %s29, 0
      %p90 = por %p88, %p89
      %p91 = scmp.ne.s32.totalorder %s77, %s78
      %p92 = scmp.eq.s32.totalorder %s30, 3
      %p93 = por %p91, %p92
      %p95 = scmp.ne.s32.totalorder %s78, %s94
      %p96 = scmp.eq.s32.totalorder %s30, 0
      %p97 = por %p95, %p96
      %s98 = ssub.s32 %s31, %s43
      %p99 = scmp.eq.s32.totalorder %s98, 0
      %s101 = sadd.s32 %s100, 1
      %s102 = scalar_select %p99, %s100, %s101
      %p105 = pneg %p99
      %p106 = scmp.eq.s32.totalorder %s24, 3
      %p107 = por %p105, %p106
      %p108 = scmp.ne.s32.totalorder %s100, %s103
      %p109 = scmp.eq.s32.totalorder %s24, 0
      %p110 = por %p108, %p109
      %p111 = scmp.ne.s32.totalorder %s100, %s103
      %p112 = scmp.eq.s32.totalorder %s29, 3
      %p113 = por %p111, %p112
      %p114 = scmp.ne.s32.totalorder %s103, %s104
      %p115 = scmp.eq.s32.totalorder %s29, 0
      %p116 = por %p114, %p115
      %p117 = scmp.ne.s32.totalorder %s103, %s104
      %p118 = scmp.eq.s32.totalorder %s30, 3
      %p119 = por %p117, %p118
      %p121 = scmp.ne.s32.totalorder %s104, %s120
      %p122 = scmp.eq.s32.totalorder %s30, 0
      %p123 = por %p121, %p122
      %s125 = sadd.s32 %s124, 1
      %p128 = scmp.eq.s32.totalorder %s24, 3
      %p129 = scmp.ne.s32.totalorder %s124, %s126
      %p130 = scmp.eq.s32.totalorder %s24, 0
      %p131 = por %p129, %p130
      %p132 = scmp.ne.s32.totalorder %s124, %s126
      %p133 = scmp.eq.s32.totalorder %s29, 3
      %p134 = por %p132, %p133
      %p135 = scmp.ne.s32.totalorder %s126, %s127
      %p136 = scmp.eq.s32.totalorder %s29, 0
      %p137 = por %p135, %p136
      %p138 = scmp.ne.s32.totalorder %s126, %s127
      %p139 = scmp.eq.s32.totalorder %s30, 3
      %p140 = por %p138, %p139
      %p142 = scmp.ne.s32.totalorder %s127, %s141
      %p143 = scmp.eq.s32.totalorder %s30, 0
      %p144 = por %p142, %p143
      %s146 = sadd.s32 %s145, 1
      %p149 = scmp.eq.s32.totalorder %s24, 3
      %p150 = scmp.ne.s32.totalorder %s145, %s147
      %p151 = scmp.eq.s32.totalorder %s24, 0
      %p152 = por %p150, %p151
      %p153 = scmp.ne.s32.totalorder %s145, %s147
      %p154 = scmp.eq.s32.totalorder %s29, 3
      %p155 = por %p153, %p154
      %p156 = scmp.ne.s32.totalorder %s147, %s148
      %p157 = scmp.eq.s32.totalorder %s29, 0
      %p158 = por %p156, %p157
      %p159 = scmp.ne.s32.totalorder %s147, %s148
      %p160 = scmp.eq.s32.totalorder %s30, 3
      %p161 = por %p159, %p160
      %p163 = scmp.ne.s32.totalorder %s148, %s162
      %p164 = scmp.eq.s32.totalorder %s30, 0
      %p165 = por %p163, %p164
      %s167 = sadd.s32 %s166, 1
      %p170 = scmp.eq.s32.totalorder %s24, 3
      %p171 = scmp.ne.s32.totalorder %s166, %s168
      %p172 = scmp.eq.s32.totalorder %s24, 0
      %p173 = por %p171, %p172
      %p174 = scmp.ne.s32.totalorder %s166, %s168
      %p175 = scmp.eq.s32.totalorder %s29, 3
      %p176 = por %p174, %p175
      %p177 = scmp.ne.s32.totalorder %s168, %s169
      %p178 = scmp.eq.s32.totalorder %s29, 0
      %p179 = por %p177, %p178
      %p180 = scmp.ne.s32.totalorder %s168, %s169
      %p181 = scmp.eq.s32.totalorder %s30, 3
      %p182 = por %p180, %p181
      %p184 = scmp.ne.s32.totalorder %s169, %s183
      %p185 = scmp.eq.s32.totalorder %s30, 0
      %p186 = por %p184, %p185
      %s188 = sadd.s32 %s187, 1
      %p191 = scmp.eq.s32.totalorder %s24, 3
      %p192 = scmp.ne.s32.totalorder %s187, %s189
      %p193 = scmp.eq.s32.totalorder %s24, 0
      %p194 = por %p192, %p193
      %p195 = scmp.ne.s32.totalorder %s187, %s189
      %p196 = scmp.eq.s32.totalorder %s29, 3
      %p197 = por %p195, %p196
      %p198 = scmp.ne.s32.totalorder %s189, %s190
      %p199 = scmp.eq.s32.totalorder %s29, 0
      %p200 = por %p198, %p199
      %p201 = scmp.ne.s32.totalorder %s189, %s190
      %p202 = scmp.eq.s32.totalorder %s30, 3
      %p203 = por %p201, %p202
      %p205 = scmp.ne.s32.totalorder %s190, %s204
      %p206 = scmp.eq.s32.totalorder %s30, 0
      %p207 = por %p205, %p206
      %s209 = sadd.s32 %s208, 1
      %p212 = scmp.eq.s32.totalorder %s24, 3
      %p213 = scmp.ne.s32.totalorder %s208, %s210
      %p214 = scmp.eq.s32.totalorder %s24, 0
      %p215 = por %p213, %p214
      %p216 = scmp.ne.s32.totalorder %s208, %s210
      %p217 = scmp.eq.s32.totalorder %s29, 3
      %p218 = por %p216, %p217
      %p219 = scmp.ne.s32.totalorder %s210, %s211
      %p220 = scmp.eq.s32.totalorder %s29, 0
      %p221 = por %p219, %p220
      %p222 = scmp.ne.s32.totalorder %s210, %s211
      %p223 = scmp.eq.s32.totalorder %s30, 3
      %p224 = por %p222, %p223
      %p226 = scmp.ne.s32.totalorder %s211, %s225
      %p227 = scmp.eq.s32.totalorder %s30, 0
      %p228 = por %p226, %p227
      %s230 = sadd.s32 %s229, 1
      %p233 = scmp.eq.s32.totalorder %s24, 3
      %p234 = scmp.ne.s32.totalorder %s229, %s231
      %p235 = scmp.eq.s32.totalorder %s24, 0
      %p236 = por %p234, %p235
      %p237 = scmp.ne.s32.totalorder %s229, %s231
      %p238 = scmp.eq.s32.totalorder %s29, 3
      %p239 = por %p237, %p238
      %p240 = scmp.ne.s32.totalorder %s231, %s232
      %p241 = scmp.eq.s32.totalorder %s29, 0
      %p242 = por %p240, %p241
      %p243 = scmp.ne.s32.totalorder %s231, %s232
      %p244 = scmp.eq.s32.totalorder %s30, 3
      %p245 = por %p243, %p244
      %p247 = scmp.ne.s32.totalorder %s232, %s246
      %p248 = scmp.eq.s32.totalorder %s30, 0
      %p249 = por %p247, %p248
      %s251 = sadd.s32 %s250, 1
      %p254 = scmp.eq.s32.totalorder %s24, 3
      %p255 = scmp.ne.s32.totalorder %s250, %s252
      %p256 = scmp.eq.s32.totalorder %s24, 0
      %p257 = por %p255, %p256
      %p258 = scmp.ne.s32.totalorder %s250, %s252
      %p259 = scmp.eq.s32.totalorder %s29, 3
      %p260 = por %p258, %p259
      %p261 = scmp.ne.s32.totalorder %s252, %s253
      %p262 = scmp.eq.s32.totalorder %s29, 0
      %p263 = por %p261, %p262
      %p264 = scmp.ne.s32.totalorder %s252, %s253
      %p265 = scmp.eq.s32.totalorder %s30, 3
      %p266 = por %p264, %p265
      %p268 = scmp.ne.s32.totalorder %s253, %s267
      %p269 = scmp.eq.s32.totalorder %s30, 0
      %p270 = por %p268, %p269
      %s272 = sadd.s32 %s271, 1
      %p275 = scmp.eq.s32.totalorder %s24, 3
      %p276 = scmp.ne.s32.totalorder %s271, %s273
      %p277 = scmp.eq.s32.totalorder %s24, 0
      %p278 = por %p276, %p277
      %p279 = scmp.ne.s32.totalorder %s271, %s273
      %p280 = scmp.eq.s32.totalorder %s29, 3
      %p281 = por %p279, %p280
      %p282 = scmp.ne.s32.totalorder %s273, %s274
      %p283 = scmp.eq.s32.totalorder %s29, 0
      %p284 = por %p282, %p283
      %p285 = scmp.ne.s32.totalorder %s273, %s274
      %p286 = scmp.eq.s32.totalorder %s30, 3
      %p287 = por %p285, %p286
      %p289 = scmp.ne.s32.totalorder %s274, %s288
      %p290 = scmp.eq.s32.totalorder %s30, 0
      %p291 = por %p289, %p290
      %s293 = sadd.s32 %s292, 1
      %p296 = scmp.eq.s32.totalorder %s24, 3
      %p297 = scmp.ne.s32.totalorder %s292, %s294
      %p298 = scmp.eq.s32.totalorder %s24, 0
      %p299 = por %p297, %p298
      %p300 = scmp.ne.s32.totalorder %s292, %s294
      %p301 = scmp.eq.s32.totalorder %s29, 3
      %p302 = por %p300, %p301
      %p303 = scmp.ne.s32.totalorder %s294, %s295
      %p304 = scmp.eq.s32.totalorder %s29, 0
      %p305 = por %p303, %p304
      %p306 = scmp.ne.s32.totalorder %s294, %s295
      %p307 = scmp.eq.s32.totalorder %s30, 3
      %p308 = por %p306, %p307
      %p310 = scmp.ne.s32.totalorder %s295, %s309
      %p311 = scmp.eq.s32.totalorder %s30, 0
      %p312 = por %p310, %p311
      %s313 = ssub.s32 %s31, %s43
      %p314 = scmp.eq.s32.totalorder %s313, 0
      %s316 = sadd.s32 %s315, 1
      %s317 = scalar_select %p314, %s315, %s316
      %p320 = pneg %p314
      %p321 = scmp.eq.s32.totalorder %s24, 3
      %p322 = por %p320, %p321
      %p323 = scmp.ne.s32.totalorder %s315, %s318
      %p324 = scmp.eq.s32.totalorder %s24, 0
      %p325 = por %p323, %p324
      %p326 = scmp.ne.s32.totalorder %s315, %s318
      %p327 = scmp.eq.s32.totalorder %s29, 3
      %p328 = por %p326, %p327
      %p329 = scmp.ne.s32.totalorder %s318, %s319
      %p330 = scmp.eq.s32.totalorder %s29, 0
      %p331 = por %p329, %p330
      %p332 = scmp.ne.s32.totalorder %s318, %s319
      %p333 = scmp.eq.s32.totalorder %s30, 3
      %p334 = por %p332, %p333
      %p336 = scmp.ne.s32.totalorder %s319, %s335
      %p337 = scmp.eq.s32.totalorder %s30, 0
      %p338 = por %p336, %p337
      %p339 = scmp.le.s32.totalorder 1, %s24
      %p340 = scmp.lt.s32.totalorder %s24, 5
      %p341 = pnand %p339, %p340
      %p342 = pneg %p341
      // Predicated region
      $region9: #{tpu_custom_call.1} parent=5 // pred_check
        _
      $region10: #{tpu_custom_call.1} parent=5 // pred_check_branch
        %344 = sbr.rel (%p341) target = $region12
      $region11: #{tpu_custom_call.1} parent=5 // pred_region
        %s345 = ssub.s32 %s24, 1
        // Predicated region
        $region13: #{tpu_custom_call.1} parent=11 // pred_check
          %p346 = pneg %p137
        $region14: #{tpu_custom_call.1} parent=11 // pred_check_branch
          %348 = sbr.rel (%p346) target = $region16
        $region15: #{tpu_custom_call.1} parent=11 // pred_region
          _
        $region16: #{tpu_custom_call.1} parent=11 // pred_fallthru
          _
        // Predicated region
        $region17: #{tpu_custom_call.1} parent=11 // pred_check
          %p349 = pneg %p158
        $region18: #{tpu_custom_call.1} parent=11 // pred_check_branch
          %351 = sbr.rel (%p349) target = $region20
        $region19: #{tpu_custom_call.1} parent=11 // pred_region
          _
        $region20: #{tpu_custom_call.1} parent=11 // pred_fallthru
          _
        // Predicated region
        $region21: #{tpu_custom_call.1} parent=11 // pred_check
          %p352 = pneg %p179
        $region22: #{tpu_custom_call.1} parent=11 // pred_check_branch
          %354 = sbr.rel (%p352) target = $region24
        $region23: #{tpu_custom_call.1} parent=11 // pred_region
          _
        $region24: #{tpu_custom_call.1} parent=11 // pred_fallthru
          _
        // Predicated region
        $region25: #{tpu_custom_call.1} parent=11 // pred_check
          %p355 = pneg %p200
        $region26: #{tpu_custom_call.1} parent=11 // pred_check_branch
          %357 = sbr.rel (%p355) target = $region28
        $region27: #{tpu_custom_call.1} parent=11 // pred_region
          _
        $region28: #{tpu_custom_call.1} parent=11 // pred_fallthru
          _
        // Predicated region
        $region29: #{tpu_custom_call.1} parent=11 // pred_check
          %p358 = pneg %p221
        $region30: #{tpu_custom_call.1} parent=11 // pred_check_branch
          %360 = sbr.rel (%p358) target = $region32
        $region31: #{tpu_custom_call.1} parent=11 // pred_region
          _
        $region32: #{tpu_custom_call.1} parent=11 // pred_fallthru
          _
        // Predicated region
        $region33: #{tpu_custom_call.1} parent=11 // pred_check
          %p361 = pneg %p242
        $region34: #{tpu_custom_call.1} parent=11 // pred_check_branch
          %363 = sbr.rel (%p361) target = $region36
        $region35: #{tpu_custom_call.1} parent=11 // pred_region
          _
        $region36: #{tpu_custom_call.1} parent=11 // pred_fallthru
          _
        // Predicated region
        $region37: #{tpu_custom_call.1} parent=11 // pred_check
          %p364 = pneg %p263
        $region38: #{tpu_custom_call.1} parent=11 // pred_check_branch
          %366 = sbr.rel (%p364) target = $region40
        $region39: #{tpu_custom_call.1} parent=11 // pred_region
          _
        $region40: #{tpu_custom_call.1} parent=11 // pred_fallthru
          _
        // Predicated region
        $region41: #{tpu_custom_call.1} parent=11 // pred_check
          %p367 = pneg %p284
        $region42: #{tpu_custom_call.1} parent=11 // pred_check_branch
          %369 = sbr.rel (%p367) target = $region44
        $region43: #{tpu_custom_call.1} parent=11 // pred_region
          _
        $region44: #{tpu_custom_call.1} parent=11 // pred_fallthru
          _
        // Predicated region
        $region45: #{tpu_custom_call.1} parent=11 // pred_check
          %p370 = pneg %p305
        $region46: #{tpu_custom_call.1} parent=11 // pred_check_branch
          %372 = sbr.rel (%p370) target = $region48
        $region47: #{tpu_custom_call.1} parent=11 // pred_region
          _
        $region48: #{tpu_custom_call.1} parent=11 // pred_fallthru
          _
      $region12: #{tpu_custom_call.1} parent=5 // pred_fallthru
        _
      %p373 = scmp.lt.s32.totalorder %s24, 4
      // Predicated region
      $region49: #{tpu_custom_call.1} parent=5 // pred_check
        %p374 = pneg %p373
      $region50: #{tpu_custom_call.1} parent=5 // pred_check_branch
        %376 = sbr.rel (%p374) target = $region52
      $region51: #{tpu_custom_call.1} parent=5 // pred_region
        // Predicated region
        $region53: #{tpu_custom_call.1} parent=51 // pred_check
          %p377 = pneg %p58
        $region54: #{tpu_custom_call.1} parent=51 // pred_check_branch
          %379 = sbr.rel (%p377) target = $region56
        $region55: #{tpu_custom_call.1} parent=51 // pred_region
          #allocation8 [shape = 'u32[6]{0}', space=smem, size = 0x18, scoped, tag = 'DMA stride descriptor']
          %s380 = sand.u32 %s48, 1
          %s381 = scalar_lea.sflag [#allocation4], %s380
          %s382 = sand.u32 %s48, 1
          %s383 = smul.addr %s382, 128
          %s384 = scalar_lea.vmem [#allocation3], %s383
          %s385 = smul.u32 16, %s31
          %s387 = ssub.s32 2048, 2048
          %388 = vsyncadd %s381, %s387
          %s389 = smul.addr %s385, 2
          %s390 = sadd.s32 %s32, %s389
          %s391 = smul.addr %s390, 64
          %s392 = scalar_lea.hbm %s0, %s391
          %s394 = sshll.u32 1, 14
          %s395 = sxor.u32 4294967295, %s394
          %s397 = sld [smem:[#allocation0]]
          %s398 = sadd.s32 2, %s397
          %s400 = sshll.u32 7, 26
          %s401 = sxor.u32 4294967295, %s400
          %s402 = sand.u32 0, %s401
          %s403 = sshll.u32 %s398, 26
          %s404 = sor.u32 %s402, %s403
          %s405 = sshll.u32 %s384, 4
          %s406 = int_to_ptr.vmem [resolvable:$true] %s405
          %412 = sst [smem:[#allocation8]] 4096
          %s413 = scalar_lea.smem [#allocation8], 1
          %414 = sst [smem:[%s413]] 1024
          %s415 = scalar_lea.smem [#allocation8], 2
          %416 = sst [smem:[%s415]] 16
          %s417 = scalar_lea.smem [#allocation8], 3
          %418 = sst [smem:[%s417]] 128
          %s419 = scalar_lea.smem [#allocation8], 4
          %420 = sst [smem:[%s419]] 64
          %s421 = scalar_lea.smem [#allocation8], 5
          %422 = sst [smem:[%s421]] 4
          %424 = dma.general %s392, 2048, %s406, %s381, [#allocation7], [#allocation8], %s404, 0
        $region56: #{tpu_custom_call.1} parent=51 // pred_fallthru
          _
        // Predicated region
        $region57: #{tpu_custom_call.1} parent=51 // pred_check
          %p425 = pneg %p84
        $region58: #{tpu_custom_call.1} parent=51 // pred_check_branch
          %427 = sbr.rel (%p425) target = $region60
        $region59: #{tpu_custom_call.1} parent=51 // pred_region
          %s428 = smul.u32 16, %s32
          %p429 = scmp.lt.s32.totalorder %s428, 31
          %s430 = scalar_select %p429, %s428, 31
          %s431 = smul.addr %s430, 4
          %s432 = scalar_lea.vmem %s1, %s431
          %s433 = smul.u32 16, %s32
        $region60: #{tpu_custom_call.1} parent=51 // pred_fallthru
          _
        // Predicated region
        $region61: #{tpu_custom_call.1} parent=51 // pred_check
          %p434 = pneg %p110
        $region62: #{tpu_custom_call.1} parent=51 // pred_check_branch
          %436 = sbr.rel (%p434) target = $region64
        $region63: #{tpu_custom_call.1} parent=51 // pred_region
          %s437 = smul.u32 16, %s31
          %p438 = scmp.lt.s32.totalorder %s437, 31
          %s439 = scalar_select %p438, %s437, 31
          %s440 = smul.addr %s439, 8
          %s441 = scalar_lea.vmem %s2, %s440
          %s442 = smul.u32 16, %s31
        $region64: #{tpu_custom_call.1} parent=51 // pred_fallthru
          _
      $region52: #{tpu_custom_call.1} parent=5 // pred_fallthru
        _
      %p443 = scmp.le.s32.totalorder 1, %s24
      %p444 = scmp.lt.s32.totalorder %s24, 5
      %p445 = pnand %p443, %p444
      %p446 = pneg %p445
      // Predicated region
      $region65: #{tpu_custom_call.1} parent=5 // pred_check
        _
      $region66: #{tpu_custom_call.1} parent=5 // pred_check_branch
        %448 = sbr.rel (%p445) target = $region68
      $region67: #{tpu_custom_call.1} parent=5 // pred_region
        %s449 = ssub.s32 %s24, 1
        %s450 = sand.u32 %s51, 1
        %s451 = scalar_lea.sflag [#allocation4], %s450
        %s452 = sand.u32 %s51, 1
        %s453 = smul.addr %s452, 128
        %s454 = scalar_lea.vmem [#allocation3], %s453
        // Predicated region
        $region69: #{tpu_custom_call.1} parent=67 // pred_check
          %p455 = pneg %p64
        $region70: #{tpu_custom_call.1} parent=67 // pred_check_branch
          %457 = sbr.rel (%p455) target = $region72
        $region71: #{tpu_custom_call.1} parent=67 // pred_region
          %458 = dma.done %s451, 2048
        $region72: #{tpu_custom_call.1} parent=67 // pred_fallthru
          _
        %s459 = sand.u32 %s51, 1
        %s460 = scalar_lea.sflag [#allocation4], %s459
        %s461 = sand.u32 %s51, 1
        %s462 = smul.addr %s461, 128
        %s463 = scalar_lea.vmem [#allocation3], %s462
        %p464 = pneg %p64
        %p465 = pneg %p61
        %s466 = smul.u32 16, %s34
        %p467 = scmp.lt.s32.totalorder %s466, 31
        %s468 = scalar_select %p467, %s466, 31
        %s469 = smul.addr %s468, 4
        %s470 = scalar_lea.vmem %s1, %s469
        %p471 = pneg %p90
        %p472 = pneg %p87
        %s473 = smul.u32 16, %s33
        %p474 = scmp.lt.s32.totalorder %s473, 31
        %s475 = scalar_select %p474, %s473, 31
        %s476 = smul.addr %s475, 8
        %s477 = scalar_lea.vmem %s2, %s476
        %p478 = pneg %p116
        %p479 = pneg %p113
        %p480 = pneg %p137
        %p481 = pneg %p134
        %p482 = pneg %p158
        %p483 = pneg %p155
        %p484 = pneg %p179
        %p485 = pneg %p176
        %p486 = pneg %p200
        %p487 = pneg %p197
        %p488 = pneg %p221
        %p489 = pneg %p218
        %p490 = pneg %p242
        %p491 = pneg %p239
        %p492 = pneg %p263
        %p493 = pneg %p260
        %p494 = pneg %p284
        %p495 = pneg %p281
        %p496 = pneg %p305
        %p497 = pneg %p302
        %p498 = pneg %p331
        %p499 = pneg %p328
        %s500 = sand.u32 %s318, 1
        %s501 = scalar_lea.sflag [#allocation5], %s500
        %s502 = sand.u32 %s318, 1
        %s503 = smul.addr %s502, 64
        %s504 = scalar_lea.vmem [#allocation6], %s503
        %s505 = smul.u32 16, %s33
        %s506 = smul.u32 16, %s34
        %p507 = scmp.lt.s32.totalorder %s506, 31
        %s508 = scalar_select %p507, %s506, 31
        %s509 = smul.addr %s508, 4
        %s510 = scalar_lea.vmem %s1, %s509
        %s511 = smul.u32 16, %s34
        %s512 = smul.u32 16, %s33
        %p513 = scmp.lt.s32.totalorder %s512, 31
        %s514 = scalar_select %p513, %s512, 31
        %s515 = smul.addr %s514, 8
        %s516 = scalar_lea.vmem %s2, %s515
        %s517 = smul.u32 16, %s33
        %s518 = smul.u32 16, %s33
        %p520 = scmp.eq.s32.totalorder %s34, 0
        // Predicated region
        $region73: #{tpu_custom_call.1} parent=67 // pred_check
          %p521 = pneg %p520
        $region74: #{tpu_custom_call.1} parent=67 // pred_check_branch
          %523 = sbr.rel (%p521) target = $region76
        $region75: #{tpu_custom_call.1} parent=67 // pred_region
          %vm524 = vcmask 261120
          %525 = vst.msk [vmem:[#allocation2] sm:$0xff] %vm524, 0.0
          %526 = vst.msk [vmem:[#allocation2 + $0x8] sm:$0xff] %vm524, 0.0
          %527 = vst.msk [vmem:[#allocation2 + $0x10] sm:$0xff] %vm524, 0.0
          %528 = vst.msk [vmem:[#allocation2 + $0x18] sm:$0xff] %vm524, 0.0
          %529 = vst.msk [vmem:[#allocation2 + $0x20] sm:$0xff] %vm524, 0.0
          %530 = vst.msk [vmem:[#allocation2 + $0x28] sm:$0xff] %vm524, 0.0
          %531 = vst.msk [vmem:[#allocation2 + $0x30] sm:$0xff] %vm524, 0.0
          %532 = vst.msk [vmem:[#allocation2 + $0x38] sm:$0xff] %vm524, 0.0
          %533 = vst.msk [vmem:[#allocation2 + $0x40] sm:$0xff] %vm524, 0.0
          %534 = vst.msk [vmem:[#allocation2 + $0x48] sm:$0xff] %vm524, 0.0
          %535 = vst.msk [vmem:[#allocation2 + $0x50] sm:$0xff] %vm524, 0.0
          %536 = vst.msk [vmem:[#allocation2 + $0x58] sm:$0xff] %vm524, 0.0
          %537 = vst.msk [vmem:[#allocation2 + $0x60] sm:$0xff] %vm524, 0.0
          %538 = vst.msk [vmem:[#allocation2 + $0x68] sm:$0xff] %vm524, 0.0
          %539 = vst.msk [vmem:[#allocation2 + $0x70] sm:$0xff] %vm524, 0.0
          %540 = vst.msk [vmem:[#allocation2 + $0x78] sm:$0xff] %vm524, 0.0
          %541 = vst.msk [vmem:[#allocation2 + $0x80] sm:$0xff] %vm524, 0.0
          %542 = vst.msk [vmem:[#allocation2 + $0x88] sm:$0xff] %vm524, 0.0
          %543 = vst.msk [vmem:[#allocation2 + $0x90] sm:$0xff] %vm524, 0.0
          %544 = vst.msk [vmem:[#allocation2 + $0x98] sm:$0xff] %vm524, 0.0
          %545 = vst.msk [vmem:[#allocation2 + $0xa0] sm:$0xff] %vm524, 0.0
          %546 = vst.msk [vmem:[#allocation2 + $0xa8] sm:$0xff] %vm524, 0.0
          %547 = vst.msk [vmem:[#allocation2 + $0xb0] sm:$0xff] %vm524, 0.0
          %548 = vst.msk [vmem:[#allocation2 + $0xb8] sm:$0xff] %vm524, 0.0
          %549 = vst.msk [vmem:[#allocation2 + $0xc0] sm:$0xff] %vm524, 0.0
          %550 = vst.msk [vmem:[#allocation2 + $0xc8] sm:$0xff] %vm524, 0.0
          %551 = vst.msk [vmem:[#allocation2 + $0xd0] sm:$0xff] %vm524, 0.0
          %552 = vst.msk [vmem:[#allocation2 + $0xd8] sm:$0xff] %vm524, 0.0
          %553 = vst.msk [vmem:[#allocation2 + $0xe0] sm:$0xff] %vm524, 0.0
          %554 = vst.msk [vmem:[#allocation2 + $0xe8] sm:$0xff] %vm524, 0.0
          %555 = vst.msk [vmem:[#allocation2 + $0xf0] sm:$0xff] %vm524, 0.0
          %556 = vst.msk [vmem:[#allocation2 + $0xf8] sm:$0xff] %vm524, 0.0
        $region76: #{tpu_custom_call.1} parent=67 // pred_fallthru
          _
        %v557 = vld [vmem:[%s454] sm:$0xf]
        %v558 = vld [vmem:[%s454 + $0x4] sm:$0xf]
        %v559 = vld [vmem:[%s454 + $0x8] sm:$0xf]
        %v560 = vld [vmem:[%s454 + $0xc] sm:$0xf]
        %v561 = vld [vmem:[%s454 + $0x10] sm:$0xf]
        %v562 = vld [vmem:[%s454 + $0x14] sm:$0xf]
        %v563 = vld [vmem:[%s454 + $0x18] sm:$0xf]
        %v564 = vld [vmem:[%s454 + $0x1c] sm:$0xf]
        %v565 = vld [vmem:[%s454 + $0x20] sm:$0xf]
        %v566 = vld [vmem:[%s454 + $0x24] sm:$0xf]
        %v567 = vld [vmem:[%s454 + $0x28] sm:$0xf]
        %v568 = vld [vmem:[%s454 + $0x2c] sm:$0xf]
        %v569 = vld [vmem:[%s454 + $0x30] sm:$0xf]
        %v570 = vld [vmem:[%s454 + $0x34] sm:$0xf]
        %v571 = vld [vmem:[%s454 + $0x38] sm:$0xf]
        %v572 = vld [vmem:[%s454 + $0x3c] sm:$0xf]
        %v573 = vld [vmem:[%s454 + $0x40] sm:$0xf]
        %v574 = vld [vmem:[%s454 + $0x44] sm:$0xf]
        %v575 = vld [vmem:[%s454 + $0x48] sm:$0xf]
        %v576 = vld [vmem:[%s454 + $0x4c] sm:$0xf]
        %v577 = vld [vmem:[%s454 + $0x50] sm:$0xf]
        %v578 = vld [vmem:[%s454 + $0x54] sm:$0xf]
        %v579 = vld [vmem:[%s454 + $0x58] sm:$0xf]
        %v580 = vld [vmem:[%s454 + $0x5c] sm:$0xf]
        %v581 = vld [vmem:[%s454 + $0x60] sm:$0xf]
        %v582 = vld [vmem:[%s454 + $0x64] sm:$0xf]
        %v583 = vld [vmem:[%s454 + $0x68] sm:$0xf]
        %v584 = vld [vmem:[%s454 + $0x6c] sm:$0xf]
        %v585 = vld [vmem:[%s454 + $0x70] sm:$0xf]
        %v586 = vld [vmem:[%s454 + $0x74] sm:$0xf]
        %v587 = vld [vmem:[%s454 + $0x78] sm:$0xf]
        %v588 = vld [vmem:[%s454 + $0x7c] sm:$0xf]
        %v589 = vld [vmem:[#allocation2] sm:$0xff]
        %v590 = vld [vmem:[#allocation2 + $0x8] sm:$0xff]
        %v591 = vld [vmem:[#allocation2 + $0x10] sm:$0xff]
        %v592 = vld [vmem:[#allocation2 + $0x18] sm:$0xff]
        %v593 = vld [vmem:[#allocation2 + $0x20] sm:$0xff]
        %v594 = vld [vmem:[#allocation2 + $0x28] sm:$0xff]
        %v595 = vld [vmem:[#allocation2 + $0x30] sm:$0xff]
        %v596 = vld [vmem:[#allocation2 + $0x38] sm:$0xff]
        %v597 = vld [vmem:[#allocation2 + $0x40] sm:$0xff]
        %v598 = vld [vmem:[#allocation2 + $0x48] sm:$0xff]
        %v599 = vld [vmem:[#allocation2 + $0x50] sm:$0xff]
        %v600 = vld [vmem:[#allocation2 + $0x58] sm:$0xff]
        %v601 = vld [vmem:[#allocation2 + $0x60] sm:$0xff]
        %v602 = vld [vmem:[#allocation2 + $0x68] sm:$0xff]
        %v603 = vld [vmem:[#allocation2 + $0x70] sm:$0xff]
        %v604 = vld [vmem:[#allocation2 + $0x78] sm:$0xff]
        %v605 = vld [vmem:[#allocation2 + $0x80] sm:$0xff]
        %v606 = vld [vmem:[#allocation2 + $0x88] sm:$0xff]
        %v607 = vld [vmem:[#allocation2 + $0x90] sm:$0xff]
        %v608 = vld [vmem:[#allocation2 + $0x98] sm:$0xff]
        %v609 = vld [vmem:[#allocation2 + $0xa0] sm:$0xff]
        %v610 = vld [vmem:[#allocation2 + $0xa8] sm:$0xff]
        %v611 = vld [vmem:[#allocation2 + $0xb0] sm:$0xff]
        %v612 = vld [vmem:[#allocation2 + $0xb8] sm:$0xff]
        %v613 = vld [vmem:[#allocation2 + $0xc0] sm:$0xff]
        %v614 = vld [vmem:[#allocation2 + $0xc8] sm:$0xff]
        %v615 = vld [vmem:[#allocation2 + $0xd0] sm:$0xff]
        %v616 = vld [vmem:[#allocation2 + $0xd8] sm:$0xff]
        %v617 = vld [vmem:[#allocation2 + $0xe0] sm:$0xff]
        %v618 = vld [vmem:[#allocation2 + $0xe8] sm:$0xff]
        %v619 = vld [vmem:[#allocation2 + $0xf0] sm:$0xff]
        %v620 = vld [vmem:[#allocation2 + $0xf8] sm:$0xff]
        %v621 = vld [vmem:[%s510] sm:$0xf]
        %v622 = vld [vmem:[%s510 + $0x4] sm:$0xf]
        %v623 = vld [vmem:[%s510 + $0x8] sm:$0xf]
        %v624 = vld [vmem:[%s510 + $0xc] sm:$0xf]
        %v625 = vld [vmem:[%s510 + $0x10] sm:$0xf]
        %v626 = vld [vmem:[%s510 + $0x14] sm:$0xf]
        %v627 = vld [vmem:[%s510 + $0x18] sm:$0xf]
        %v628 = vld [vmem:[%s510 + $0x1c] sm:$0xf]
        %v629 = vld [vmem:[%s510 + $0x20] sm:$0xf]
        %v630 = vld [vmem:[%s510 + $0x24] sm:$0xf]
        %v631 = vld [vmem:[%s510 + $0x28] sm:$0xf]
        %v632 = vld [vmem:[%s510 + $0x2c] sm:$0xf]
        %v633 = vld [vmem:[%s510 + $0x30] sm:$0xf]
        %v634 = vld [vmem:[%s510 + $0x34] sm:$0xf]
        %v635 = vld [vmem:[%s510 + $0x38] sm:$0xf]
        %v636 = vld [vmem:[%s510 + $0x3c] sm:$0xf]
        %v669 = vunpack.c.l.b16 %v557
        %v670 = vunpack.c.l.b16 %v558
        %v671 = vunpack.c.l.b16 %v559
        %v672 = vunpack.c.l.b16 %v560
        %v673 = vunpack.c.l.b16 %v561
        %v674 = vunpack.c.l.b16 %v562
        %v675 = vunpack.c.l.b16 %v563
        %v676 = vunpack.c.l.b16 %v564
        %v677 = vunpack.c.l.b16 %v565
        %v678 = vunpack.c.l.b16 %v566
        %v679 = vunpack.c.l.b16 %v567
        %v680 = vunpack.c.l.b16 %v568
        %v681 = vunpack.c.l.b16 %v569
        %v682 = vunpack.c.l.b16 %v570
        %v683 = vunpack.c.l.b16 %v571
        %v684 = vunpack.c.l.b16 %v572
        %v685 = vunpack.c.l.b16 %v573
        %v686 = vunpack.c.l.b16 %v574
        %v687 = vunpack.c.l.b16 %v575
        %v688 = vunpack.c.l.b16 %v576
        %v689 = vunpack.c.l.b16 %v577
        %v690 = vunpack.c.l.b16 %v578
        %v691 = vunpack.c.l.b16 %v579
        %v692 = vunpack.c.l.b16 %v580
        %v693 = vunpack.c.l.b16 %v581
        %v694 = vunpack.c.l.b16 %v582
        %v695 = vunpack.c.l.b16 %v583
        %v696 = vunpack.c.l.b16 %v584
        %v697 = vunpack.c.l.b16 %v585
        %v698 = vunpack.c.l.b16 %v586
        %v699 = vunpack.c.l.b16 %v587
        %v700 = vunpack.c.l.b16 %v588
        %v701 = vpack.c.b16 %v670, %v669
        %v702 = vpack.c.b16 %v672, %v671
        %v703 = vpack.c.b16 %v674, %v673
        %v704 = vpack.c.b16 %v676, %v675
        %v705 = vpack.c.b16 %v678, %v677
        %v706 = vpack.c.b16 %v680, %v679
        %v707 = vpack.c.b16 %v682, %v681
        %v708 = vpack.c.b16 %v684, %v683
        %v709 = vpack.c.b16 %v686, %v685
        %v710 = vpack.c.b16 %v688, %v687
        %v711 = vpack.c.b16 %v690, %v689
        %v712 = vpack.c.b16 %v692, %v691
        %v713 = vpack.c.b16 %v694, %v693
        %v714 = vpack.c.b16 %v696, %v695
        %v715 = vpack.c.b16 %v698, %v697
        %v716 = vpack.c.b16 %v700, %v699
        %v749 = vunpack.c.l.b16 %v621
        %v750 = vunpack.c.l.b16 %v622
        %v751 = vunpack.c.l.b16 %v623
        %v752 = vunpack.c.l.b16 %v624
        %v753 = vunpack.c.l.b16 %v625
        %v754 = vunpack.c.l.b16 %v626
        %v755 = vunpack.c.l.b16 %v627
        %v756 = vunpack.c.l.b16 %v628
        %v757 = vunpack.c.l.b16 %v629
        %v758 = vunpack.c.l.b16 %v630
        %v759 = vunpack.c.l.b16 %v631
        %v760 = vunpack.c.l.b16 %v632
        %v761 = vunpack.c.l.b16 %v633
        %v762 = vunpack.c.l.b16 %v634
        %v763 = vunpack.c.l.b16 %v635
        %v764 = vunpack.c.l.b16 %v636
        %v765 = vpack.c.b16 %v750, %v749
        %v766 = vpack.c.b16 %v752, %v751
        %v767 = vpack.c.b16 %v754, %v753
        %v768 = vpack.c.b16 %v756, %v755
        %v769 = vpack.c.b16 %v758, %v757
        %v770 = vpack.c.b16 %v760, %v759
        %v771 = vpack.c.b16 %v762, %v761
        %v772 = vpack.c.b16 %v764, %v763
        %781 = vmatprep.subr.bf16.mxu0 0
        %782 = vmatpush1.bf16.msra.mxu0 %v765
        %783 = vmatprep.subr.bf16.mxu0 0
        %784 = vmatpush1.bf16.msra.mxu0 %v766
        %785 = vmatprep.subr.bf16.mxu0 0
        %786 = vmatpush1.bf16.msra.mxu0 %v767
        %787 = vmatprep.subr.bf16.mxu0 0
        %788 = vmatpush1.bf16.msra.mxu0 %v768
        %789 = vmatprep.subr.bf16.mxu0 0
        %790 = vmatpush1.bf16.msra.mxu0 %v769
        %791 = vmatprep.subr.bf16.mxu0 0
        %792 = vmatpush1.bf16.msra.mxu0 %v770
        %793 = vmatprep.subr.bf16.mxu0 0
        %794 = vmatpush1.bf16.msra.mxu0 %v771
        %795 = vmatprep.subr.bf16.mxu0 0
        %796 = vmatpush1.bf16.msra.mxu0 %v772
        %797 = vmatprep.subr.bf16.mxu0 0
        %798 = vmatpush1.bf16.msra.mxu0 0
        %799 = vmatprep.subr.bf16.mxu0 0
        %800 = vmatpush1.bf16.msra.mxu0 0
        %801 = vmatprep.subr.bf16.mxu0 0
        %802 = vmatpush1.bf16.msra.mxu0 0
        %803 = vmatprep.subr.bf16.mxu0 0
        %804 = vmatpush1.bf16.msra.mxu0 0
        %805 = vmatprep.subr.bf16.mxu0 0
        %806 = vmatpush1.bf16.msra.mxu0 0
        %807 = vmatprep.subr.bf16.mxu0 0
        %808 = vmatpush1.bf16.msra.mxu0 0
        %809 = vmatprep.subr.bf16.mxu0 0
        %810 = vmatpush1.bf16.msra.mxu0 0
        %811 = vmatprep.subr.bf16.mxu0 0
        %812 = vmatpush1.bf16.msra.mxu0 0
        %813 = vmatprep.mubr.bf16.mxu0 0
        %814 = vmatmul.mubr.bf16.gmra.mrb[0].mxu0 %v701
        %v815 = vpop.f32.mrb[0].mxu0
        %v816 = vadd.f32 0.0, %v815
        %v817 = vpop.f32.mrb[0].mxu0
        %v818 = vpop.f32.mrb[0].mxu0
        %v819 = vadd.f32 0.0, %v818
        %v820 = vpop.f32.mrb[0].mxu0
        %821 = vmatprep.mubr.bf16.mxu0 0
        %822 = vmatmul.mubr.bf16.gmra.mrb[0].mxu0 %v702
        %v823 = vpop.f32.mrb[0].mxu0
        %v824 = vadd.f32 0.0, %v823
        %v825 = vpop.f32.mrb[0].mxu0
        %v826 = vpop.f32.mrb[0].mxu0
        %v827 = vadd.f32 0.0, %v826
        %v828 = vpop.f32.mrb[0].mxu0
        %829 = vmatprep.mubr.bf16.mxu0 0
        %830 = vmatmul.mubr.bf16.gmra.mrb[0].mxu0 %v703
        %v831 = vpop.f32.mrb[0].mxu0
        %v832 = vadd.f32 0.0, %v831
        %v833 = vpop.f32.mrb[0].mxu0
        %v834 = vpop.f32.mrb[0].mxu0
        %v835 = vadd.f32 0.0, %v834
        %v836 = vpop.f32.mrb[0].mxu0
        %837 = vmatprep.mubr.bf16.mxu0 0
        %838 = vmatmul.mubr.bf16.gmra.mrb[0].mxu0 %v704
        %v839 = vpop.f32.mrb[0].mxu0
        %v840 = vadd.f32 0.0, %v839
        %v841 = vpop.f32.mrb[0].mxu0
        %v842 = vpop.f32.mrb[0].mxu0
        %v843 = vadd.f32 0.0, %v842
        %v844 = vpop.f32.mrb[0].mxu0
        %845 = vmatprep.mubr.bf16.mxu0 0
        %846 = vmatmul.mubr.bf16.gmra.mrb[0].mxu0 %v705
        %v847 = vpop.f32.mrb[0].mxu0
        %v848 = vadd.f32 0.0, %v847
        %v849 = vpop.f32.mrb[0].mxu0
        %v850 = vpop.f32.mrb[0].mxu0
        %v851 = vadd.f32 0.0, %v850
        %v852 = vpop.f32.mrb[0].mxu0
        %853 = vmatprep.mubr.bf16.mxu0 0
        %854 = vmatmul.mubr.bf16.gmra.mrb[0].mxu0 %v706
        %v855 = vpop.f32.mrb[0].mxu0
        %v856 = vadd.f32 0.0, %v855
        %v857 = vpop.f32.mrb[0].mxu0
        %v858 = vpop.f32.mrb[0].mxu0
        %v859 = vadd.f32 0.0, %v858
        %v860 = vpop.f32.mrb[0].mxu0
        %861 = vmatprep.mubr.bf16.mxu0 0
        %862 = vmatmul.mubr.bf16.gmra.mrb[0].mxu0 %v707
        %v863 = vpop.f32.mrb[0].mxu0
        %v864 = vadd.f32 0.0, %v863
        %v865 = vpop.f32.mrb[0].mxu0
        %v866 = vpop.f32.mrb[0].mxu0
        %v867 = vadd.f32 0.0, %v866
        %v868 = vpop.f32.mrb[0].mxu0
        %869 = vmatprep.mubr.bf16.mxu0 0
        %870 = vmatmul.mubr.bf16.gmra.mrb[0].mxu0 %v708
        %v871 = vpop.f32.mrb[0].mxu0
        %v872 = vadd.f32 0.0, %v871
        %v873 = vpop.f32.mrb[0].mxu0
        %v874 = vpop.f32.mrb[0].mxu0
        %v875 = vadd.f32 0.0, %v874
        %v876 = vpop.f32.mrb[0].mxu0
        %877 = vmatprep.mubr.bf16.mxu0 0
        %878 = vmatmul.mubr.bf16.gmra.mrb[0].mxu0 %v709
        %v879 = vpop.f32.mrb[0].mxu0
        %v880 = vadd.f32 0.0, %v879
        %v881 = vpop.f32.mrb[0].mxu0
        %v882 = vpop.f32.mrb[0].mxu0
        %v883 = vadd.f32 0.0, %v882
        %v884 = vpop.f32.mrb[0].mxu0
        %885 = vmatprep.mubr.bf16.mxu0 0
        %886 = vmatmul.mubr.bf16.gmra.mrb[0].mxu0 %v710
        %v887 = vpop.f32.mrb[0].mxu0
        %v888 = vadd.f32 0.0, %v887
        %v889 = vpop.f32.mrb[0].mxu0
        %v890 = vpop.f32.mrb[0].mxu0
        %v891 = vadd.f32 0.0, %v890
        %v892 = vpop.f32.mrb[0].mxu0
        %893 = vmatprep.mubr.bf16.mxu0 0
        %894 = vmatmul.mubr.bf16.gmra.mrb[0].mxu0 %v711
        %v895 = vpop.f32.mrb[0].mxu0
        %v896 = vadd.f32 0.0, %v895
        %v897 = vpop.f32.mrb[0].mxu0
        %v898 = vpop.f32.mrb[0].mxu0
        %v899 = vadd.f32 0.0, %v898
        %v900 = vpop.f32.mrb[0].mxu0
        %901 = vmatprep.mubr.bf16.mxu0 0
        %902 = vmatmul.mubr.bf16.gmra.mrb[0].mxu0 %v712
        %v903 = vpop.f32.mrb[0].mxu0
        %v904 = vadd.f32 0.0, %v903
        %v905 = vpop.f32.mrb[0].mxu0
        %v906 = vpop.f32.mrb[0].mxu0
        %v907 = vadd.f32 0.0, %v906
        %v908 = vpop.f32.mrb[0].mxu0
        %909 = vmatprep.mubr.bf16.mxu0 0
        %910 = vmatmul.mubr.bf16.gmra.mrb[0].mxu0 %v713
        %v911 = vpop.f32.mrb[0].mxu0
        %v912 = vadd.f32 0.0, %v911
        %v913 = vpop.f32.mrb[0].mxu0
        %v914 = vpop.f32.mrb[0].mxu0
        %v915 = vadd.f32 0.0, %v914
        %v916 = vpop.f32.mrb[0].mxu0
        %917 = vmatprep.mubr.bf16.mxu0 0
        %918 = vmatmul.mubr.bf16.gmra.mrb[0].mxu0 %v714
        %v919 = vpop.f32.mrb[0].mxu0
        %v920 = vadd.f32 0.0, %v919
        %v921 = vpop.f32.mrb[0].mxu0
        %v922 = vpop.f32.mrb[0].mxu0
        %v923 = vadd.f32 0.0, %v922
        %v924 = vpop.f32.mrb[0].mxu0
        %925 = vmatprep.mubr.bf16.mxu0 0
        %926 = vmatmul.mubr.bf16.gmra.mrb[0].mxu0 %v715
        %v927 = vpop.f32.mrb[0].mxu0
        %v928 = vadd.f32 0.0, %v927
        %v929 = vpop.f32.mrb[0].mxu0
        %v930 = vpop.f32.mrb[0].mxu0
        %v931 = vadd.f32 0.0, %v930
        %v932 = vpop.f32.mrb[0].mxu0
        %933 = vmatprep.mubr.bf16.mxu0 0
        %934 = vmatmul.mubr.bf16.gmra.mrb[0].mxu0 %v716
        %v935 = vpop.f32.mrb[0].mxu0
        %v936 = vadd.f32 0.0, %v935
        %v937 = vpop.f32.mrb[0].mxu0
        %v938 = vpop.f32.mrb[0].mxu0
        %v939 = vadd.f32 0.0, %v938
        %v940 = vpop.f32.mrb[0].mxu0
        %941 = vdwg.mxu0
        %v942 = vadd.f32 %v589, %v816
        %v943 = vadd.f32 %v590, %v819
        %v944 = vadd.f32 %v591, %v824
        %v945 = vadd.f32 %v592, %v827
        %v946 = vadd.f32 %v593, %v832
        %v947 = vadd.f32 %v594, %v835
        %v948 = vadd.f32 %v595, %v840
        %v949 = vadd.f32 %v596, %v843
        %v950 = vadd.f32 %v597, %v848
        %v951 = vadd.f32 %v598, %v851
        %v952 = vadd.f32 %v599, %v856
        %v953 = vadd.f32 %v600, %v859
        %v954 = vadd.f32 %v601, %v864
        %v955 = vadd.f32 %v602, %v867
        %v956 = vadd.f32 %v603, %v872
        %v957 = vadd.f32 %v604, %v875
        %v958 = vadd.f32 %v605, %v880
        %v959 = vadd.f32 %v606, %v883
        %v960 = vadd.f32 %v607, %v888
        %v961 = vadd.f32 %v608, %v891
        %v962 = vadd.f32 %v609, %v896
        %v963 = vadd.f32 %v610, %v899
        %v964 = vadd.f32 %v611, %v904
        %v965 = vadd.f32 %v612, %v907
        %v966 = vadd.f32 %v613, %v912
        %v967 = vadd.f32 %v614, %v915
        %v968 = vadd.f32 %v615, %v920
        %v969 = vadd.f32 %v616, %v923
        %v970 = vadd.f32 %v617, %v928
        %v971 = vadd.f32 %v618, %v931
        %v972 = vadd.f32 %v619, %v936
        %v973 = vadd.f32 %v620, %v939
        %vm974 = vcmask 261120
        %975 = vst.msk [vmem:[#allocation2] sm:$0xff] %vm974, %v942
        %976 = vst.msk [vmem:[#allocation2 + $0x8] sm:$0xff] %vm974, %v943
        %977 = vst.msk [vmem:[#allocation2 + $0x10] sm:$0xff] %vm974, %v944
        %978 = vst.msk [vmem:[#allocation2 + $0x18] sm:$0xff] %vm974, %v945
        %979 = vst.msk [vmem:[#allocation2 + $0x20] sm:$0xff] %vm974, %v946
        %980 = vst.msk [vmem:[#allocation2 + $0x28] sm:$0xff] %vm974, %v947
        %981 = vst.msk [vmem:[#allocation2 + $0x30] sm:$0xff] %vm974, %v948
        %982 = vst.msk [vmem:[#allocation2 + $0x38] sm:$0xff] %vm974, %v949
        %983 = vst.msk [vmem:[#allocation2 + $0x40] sm:$0xff] %vm974, %v950
        %984 = vst.msk [vmem:[#allocation2 + $0x48] sm:$0xff] %vm974, %v951
        %985 = vst.msk [vmem:[#allocation2 + $0x50] sm:$0xff] %vm974, %v952
        %986 = vst.msk [vmem:[#allocation2 + $0x58] sm:$0xff] %vm974, %v953
        %987 = vst.msk [vmem:[#allocation2 + $0x60] sm:$0xff] %vm974, %v954
        %988 = vst.msk [vmem:[#allocation2 + $0x68] sm:$0xff] %vm974, %v955
        %989 = vst.msk [vmem:[#allocation2 + $0x70] sm:$0xff] %vm974, %v956
        %990 = vst.msk [vmem:[#allocation2 + $0x78] sm:$0xff] %vm974, %v957
        %991 = vst.msk [vmem:[#allocation2 + $0x80] sm:$0xff] %vm974, %v958
        %992 = vst.msk [vmem:[#allocation2 + $0x88] sm:$0xff] %vm974, %v959
        %993 = vst.msk [vmem:[#allocation2 + $0x90] sm:$0xff] %vm974, %v960
        %994 = vst.msk [vmem:[#allocation2 + $0x98] sm:$0xff] %vm974, %v961
        %995 = vst.msk [vmem:[#allocation2 + $0xa0] sm:$0xff] %vm974, %v962
        %996 = vst.msk [vmem:[#allocation2 + $0xa8] sm:$0xff] %vm974, %v963
        %997 = vst.msk [vmem:[#allocation2 + $0xb0] sm:$0xff] %vm974, %v964
        %998 = vst.msk [vmem:[#allocation2 + $0xb8] sm:$0xff] %vm974, %v965
        %999 = vst.msk [vmem:[#allocation2 + $0xc0] sm:$0xff] %vm974, %v966
        %1000 = vst.msk [vmem:[#allocation2 + $0xc8] sm:$0xff] %vm974, %v967
        %1001 = vst.msk [vmem:[#allocation2 + $0xd0] sm:$0xff] %vm974, %v968
        %1002 = vst.msk [vmem:[#allocation2 + $0xd8] sm:$0xff] %vm974, %v969
        %1003 = vst.msk [vmem:[#allocation2 + $0xe0] sm:$0xff] %vm974, %v970
        %1004 = vst.msk [vmem:[#allocation2 + $0xe8] sm:$0xff] %vm974, %v971
        %1005 = vst.msk [vmem:[#allocation2 + $0xf0] sm:$0xff] %vm974, %v972
        %1006 = vst.msk [vmem:[#allocation2 + $0xf8] sm:$0xff] %vm974, %v973
        %p1007 = scmp.eq.s32.totalorder %s34, 1
        // Predicated region
        $region77: #{tpu_custom_call.1} parent=67 // pred_check
          %p1008 = pneg %p1007
        $region78: #{tpu_custom_call.1} parent=67 // pred_check_branch
          %1010 = sbr.rel (%p1008) target = $region80
        $region79: #{tpu_custom_call.1} parent=67 // pred_region
          %v1011 = vld [vmem:[%s516] sm:$0xff]
          %v1012 = vld [vmem:[%s516 + $0x8] sm:$0xff]
          %v1013 = vld [vmem:[%s516 + $0x10] sm:$0xff]
          %v1014 = vld [vmem:[%s516 + $0x18] sm:$0xff]
          %v1015 = vld [vmem:[%s516 + $0x20] sm:$0xff]
          %v1016 = vld [vmem:[%s516 + $0x28] sm:$0xff]
          %v1017 = vld [vmem:[%s516 + $0x30] sm:$0xff]
          %v1018 = vld [vmem:[%s516 + $0x38] sm:$0xff]
          %v1019 = vld [vmem:[%s516 + $0x40] sm:$0xff]
          %v1020 = vld [vmem:[%s516 + $0x48] sm:$0xff]
          %v1021 = vld [vmem:[%s516 + $0x50] sm:$0xff]
          %v1022 = vld [vmem:[%s516 + $0x58] sm:$0xff]
          %v1023 = vld [vmem:[%s516 + $0x60] sm:$0xff]
          %v1024 = vld [vmem:[%s516 + $0x68] sm:$0xff]
          %v1025 = vld [vmem:[%s516 + $0x70] sm:$0xff]
          %v1026 = vld [vmem:[%s516 + $0x78] sm:$0xff]
          %v1027 = vld [vmem:[#allocation2] sm:$0xff]
          %v1028 = vld [vmem:[#allocation2 + $0x8] sm:$0xff]
          %v1029 = vld [vmem:[#allocation2 + $0x10] sm:$0xff]
          %v1030 = vld [vmem:[#allocation2 + $0x18] sm:$0xff]
          %v1031 = vld [vmem:[#allocation2 + $0x20] sm:$0xff]
          %v1032 = vld [vmem:[#allocation2 + $0x28] sm:$0xff]
          %v1033 = vld [vmem:[#allocation2 + $0x30] sm:$0xff]
          %v1034 = vld [vmem:[#allocation2 + $0x38] sm:$0xff]
          %v1035 = vld [vmem:[#allocation2 + $0x40] sm:$0xff]
          %v1036 = vld [vmem:[#allocation2 + $0x48] sm:$0xff]
          %v1037 = vld [vmem:[#allocation2 + $0x50] sm:$0xff]
          %v1038 = vld [vmem:[#allocation2 + $0x58] sm:$0xff]
          %v1039 = vld [vmem:[#allocation2 + $0x60] sm:$0xff]
          %v1040 = vld [vmem:[#allocation2 + $0x68] sm:$0xff]
          %v1041 = vld [vmem:[#allocation2 + $0x70] sm:$0xff]
          %v1042 = vld [vmem:[#allocation2 + $0x78] sm:$0xff]
          %v1043 = vld [vmem:[#allocation2 + $0x80] sm:$0xff]
          %v1044 = vld [vmem:[#allocation2 + $0x88] sm:$0xff]
          %v1045 = vld [vmem:[#allocation2 + $0x90] sm:$0xff]
          %v1046 = vld [vmem:[#allocation2 + $0x98] sm:$0xff]
          %v1047 = vld [vmem:[#allocation2 + $0xa0] sm:$0xff]
          %v1048 = vld [vmem:[#allocation2 + $0xa8] sm:$0xff]
          %v1049 = vld [vmem:[#allocation2 + $0xb0] sm:$0xff]
          %v1050 = vld [vmem:[#allocation2 + $0xb8] sm:$0xff]
          %v1051 = vld [vmem:[#allocation2 + $0xc0] sm:$0xff]
          %v1052 = vld [vmem:[#allocation2 + $0xc8] sm:$0xff]
          %v1053 = vld [vmem:[#allocation2 + $0xd0] sm:$0xff]
          %v1054 = vld [vmem:[#allocation2 + $0xd8] sm:$0xff]
          %v1055 = vld [vmem:[#allocation2 + $0xe0] sm:$0xff]
          %v1056 = vld [vmem:[#allocation2 + $0xe8] sm:$0xff]
          %v1057 = vld [vmem:[#allocation2 + $0xf0] sm:$0xff]
          %v1058 = vld [vmem:[#allocation2 + $0xf8] sm:$0xff]
          %1075 = vrot.lane.b32.xlu0 %v1043, 32
          %v1076 = vpop.permute.xlu0 %1075
          %1077 = vrot.lane.b32.xlu0 %v1044, 32
          %v1078 = vpop.permute.xlu0 %1077
          %1079 = vrot.lane.b32.xlu0 %v1045, 32
          %v1080 = vpop.permute.xlu0 %1079
          %1081 = vrot.lane.b32.xlu0 %v1046, 32
          %v1082 = vpop.permute.xlu0 %1081
          %1083 = vrot.lane.b32.xlu0 %v1047, 32
          %v1084 = vpop.permute.xlu0 %1083
          %1085 = vrot.lane.b32.xlu0 %v1048, 32
          %v1086 = vpop.permute.xlu0 %1085
          %1087 = vrot.lane.b32.xlu0 %v1049, 32
          %v1088 = vpop.permute.xlu0 %1087
          %1089 = vrot.lane.b32.xlu0 %v1050, 32
          %v1090 = vpop.permute.xlu0 %1089
          %1091 = vrot.lane.b32.xlu0 %v1051, 32
          %v1092 = vpop.permute.xlu0 %1091
          %1093 = vrot.lane.b32.xlu0 %v1052, 32
          %v1094 = vpop.permute.xlu0 %1093
          %1095 = vrot.lane.b32.xlu0 %v1053, 32
          %v1096 = vpop.permute.xlu0 %1095
          %1097 = vrot.lane.b32.xlu0 %v1054, 32
          %v1098 = vpop.permute.xlu0 %1097
          %1099 = vrot.lane.b32.xlu0 %v1055, 32
          %v1100 = vpop.permute.xlu0 %1099
          %1101 = vrot.lane.b32.xlu0 %v1056, 32
          %v1102 = vpop.permute.xlu0 %1101
          %1103 = vrot.lane.b32.xlu0 %v1057, 32
          %v1104 = vpop.permute.xlu0 %1103
          %1105 = vrot.lane.b32.xlu0 %v1058, 32
          %v1106 = vpop.permute.xlu0 %1105
          %v1123 = vsel %vm974, %v1027, %v1076
          %v1124 = vsel %vm974, %v1028, %v1078
          %v1125 = vsel %vm974, %v1029, %v1080
          %v1126 = vsel %vm974, %v1030, %v1082
          %v1127 = vsel %vm974, %v1031, %v1084
          %v1128 = vsel %vm974, %v1032, %v1086
          %v1129 = vsel %vm974, %v1033, %v1088
          %v1130 = vsel %vm974, %v1034, %v1090
          %v1131 = vsel %vm974, %v1035, %v1092
          %v1132 = vsel %vm974, %v1036, %v1094
          %v1133 = vsel %vm974, %v1037, %v1096
          %v1134 = vsel %vm974, %v1038, %v1098
          %v1135 = vsel %vm974, %v1039, %v1100
          %v1136 = vsel %vm974, %v1040, %v1102
          %v1137 = vsel %vm974, %v1041, %v1104
          %v1138 = vsel %vm974, %v1042, %v1106
          %v1139 = vld [vmem:[%s3] sm:$0xff]
          %v1140 = vld [vmem:[%s3 + $0x8] sm:$0xff]
          %v1141 = vld [vmem:[%s3 + $0x10] sm:$0xff]
          %v1142 = vld [vmem:[%s3 + $0x18] sm:$0xff]
          %v1143 = vld [vmem:[%s3 + $0x20] sm:$0xff]
          %v1144 = vld [vmem:[%s3 + $0x28] sm:$0xff]
          %v1145 = vld [vmem:[%s3 + $0x30] sm:$0xff]
          %v1146 = vld [vmem:[%s3 + $0x38] sm:$0xff]
          %v1147 = vld [vmem:[%s4] sm:$0xff]
          %v1148 = vld [vmem:[%s4 + $0x8] sm:$0xff]
          %v1149 = vld [vmem:[%s4 + $0x10] sm:$0xff]
          %v1150 = vld [vmem:[%s4 + $0x18] sm:$0xff]
          %v1152 = vsel %vm974, %v1011, 0
          %v1155 = vsel %vm974, %v1012, 0
          %v1158 = vsel %vm974, %v1013, 0
          %v1161 = vsel %vm974, %v1014, 0
          %v1164 = vsel %vm974, %v1015, 0
          %v1167 = vsel %vm974, %v1016, 0
          %v1170 = vsel %vm974, %v1017, 0
          %v1173 = vsel %vm974, %v1018, 0
          %v1176 = vsel %vm974, %v1019, 0
          %v1179 = vsel %vm974, %v1020, 0
          %v1182 = vsel %vm974, %v1021, 0
          %v1185 = vsel %vm974, %v1022, 0
          %v1188 = vsel %vm974, %v1023, 0
          %v1191 = vsel %vm974, %v1024, 0
          %v1194 = vsel %vm974, %v1025, 0
          %v1197 = vsel %vm974, %v1026, 0
          %1199 = vmatprep.subr.mxu0 0.0
          %1200 = vmatpush1.msra.mxu0 %v1147
          %1201 = vmatprep.subr.mxu0 0.0
          %1202 = vmatpush1.msra.mxu0 %v1148
          %1203 = vmatprep.subr.mxu0 0.0
          %1204 = vmatpush1.msra.mxu0 %v1149
          %1205 = vmatprep.subr.mxu0 0.0
          %1206 = vmatpush1.msra.mxu0 %v1150
          %1207 = vmatprep.subr.mxu0 0.0
          %1208 = vmatpush1.msra.mxu0 0.0
          %1209 = vmatprep.subr.mxu0 0.0
          %1210 = vmatpush1.msra.mxu0 0.0
          %1211 = vmatprep.subr.mxu0 0.0
          %1212 = vmatpush1.msra.mxu0 0.0
          %1213 = vmatprep.subr.mxu0 0.0
          %1214 = vmatpush1.msra.mxu0 0.0
          %1215 = vmatprep.subr.mxu0 0.0
          %1216 = vmatpush1.msra.mxu0 0.0
          %1217 = vmatprep.subr.mxu0 0.0
          %1218 = vmatpush1.msra.mxu0 0.0
          %1219 = vmatprep.subr.mxu0 0.0
          %1220 = vmatpush1.msra.mxu0 0.0
          %1221 = vmatprep.subr.mxu0 0.0
          %1222 = vmatpush1.msra.mxu0 0.0
          %1223 = vmatprep.subr.mxu0 0.0
          %1224 = vmatpush1.msra.mxu0 0.0
          %1225 = vmatprep.subr.mxu0 0.0
          %1226 = vmatpush1.msra.mxu0 0.0
          %1227 = vmatprep.subr.mxu0 0.0
          %1228 = vmatpush1.msra.mxu0 0.0
          %1229 = vmatprep.subr.mxu0 0.0
          %1230 = vmatpush1.msra.mxu0 0.0
          %1231 = vmatprep.subr.mxu0 0.0
          %1232 = vmatpush1.msra.mxu0 0.0
          %1233 = vmatprep.subr.mxu0 0.0
          %1234 = vmatpush1.msra.mxu0 0.0
          %1235 = vmatprep.subr.mxu0 0.0
          %1236 = vmatpush1.msra.mxu0 0.0
          %1237 = vmatprep.subr.mxu0 0.0
          %1238 = vmatpush1.msra.mxu0 0.0
          %1239 = vmatprep.subr.mxu0 0.0
          %1240 = vmatpush1.msra.mxu0 0.0
          %1241 = vmatprep.subr.mxu0 0.0
          %1242 = vmatpush1.msra.mxu0 0.0
          %1243 = vmatprep.subr.mxu0 0.0
          %1244 = vmatpush1.msra.mxu0 0.0
          %1245 = vmatprep.subr.mxu0 0.0
          %1246 = vmatpush1.msra.mxu0 0.0
          %1247 = vmatprep.subr.mxu0 0.0
          %1248 = vmatpush1.msra.mxu0 0.0
          %1249 = vmatprep.subr.mxu0 0.0
          %1250 = vmatpush1.msra.mxu0 0.0
          %1251 = vmatprep.subr.mxu0 0.0
          %1252 = vmatpush1.msra.mxu0 0.0
          %1253 = vmatprep.subr.mxu0 0.0
          %1254 = vmatpush1.msra.mxu0 0.0
          %1255 = vmatprep.subr.mxu0 0.0
          %1256 = vmatpush1.msra.mxu0 0.0
          %1257 = vmatprep.subr.mxu0 0.0
          %1258 = vmatpush1.msra.mxu0 0.0
          %1259 = vmatprep.subr.mxu0 0.0
          %1260 = vmatpush1.msra.mxu0 0.0
          %1261 = vmatprep.subr.mxu0 0.0
          %1262 = vmatpush1.msra.mxu0 0.0
          %1263 = vmatprep.mubr.f32.mxu0 0.0
          %1264 = vmatmul.mubr.f32.gmra.mrb[0].mxu0 %v1152
          %v1265 = vpop.f32.mrb[0].mxu0
          %v1266 = vadd.f32 0.0, %v1265
          %v1267 = vpop.f32.mrb[0].mxu0
          %1268 = vmatprep.mubr.f32.mxu0 0.0
          %1269 = vmatmul.mubr.f32.gmra.mrb[0].mxu0 %v1155
          %v1270 = vpop.f32.mrb[0].mxu0
          %v1271 = vadd.f32 0.0, %v1270
          %v1272 = vpop.f32.mrb[0].mxu0
          %1273 = vmatprep.mubr.f32.mxu0 0.0
          %1274 = vmatmul.mubr.f32.gmra.mrb[0].mxu0 %v1158
          %v1275 = vpop.f32.mrb[0].mxu0
          %v1276 = vadd.f32 0.0, %v1275
          %v1277 = vpop.f32.mrb[0].mxu0
          %1278 = vmatprep.mubr.f32.mxu0 0.0
          %1279 = vmatmul.mubr.f32.gmra.mrb[0].mxu0 %v1161
          %v1280 = vpop.f32.mrb[0].mxu0
          %v1281 = vadd.f32 0.0, %v1280
          %v1282 = vpop.f32.mrb[0].mxu0
          %1283 = vmatprep.mubr.f32.mxu0 0.0
          %1284 = vmatmul.mubr.f32.gmra.mrb[0].mxu0 %v1164
          %v1285 = vpop.f32.mrb[0].mxu0
          %v1286 = vadd.f32 0.0, %v1285
          %v1287 = vpop.f32.mrb[0].mxu0
          %1288 = vmatprep.mubr.f32.mxu0 0.0
          %1289 = vmatmul.mubr.f32.gmra.mrb[0].mxu0 %v1167
          %v1290 = vpop.f32.mrb[0].mxu0
          %v1291 = vadd.f32 0.0, %v1290
          %v1292 = vpop.f32.mrb[0].mxu0
          %1293 = vmatprep.mubr.f32.mxu0 0.0
          %1294 = vmatmul.mubr.f32.gmra.mrb[0].mxu0 %v1170
          %v1295 = vpop.f32.mrb[0].mxu0
          %v1296 = vadd.f32 0.0, %v1295
          %v1297 = vpop.f32.mrb[0].mxu0
          %1298 = vmatprep.mubr.f32.mxu0 0.0
          %1299 = vmatmul.mubr.f32.gmra.mrb[0].mxu0 %v1173
          %v1300 = vpop.f32.mrb[0].mxu0
          %v1301 = vadd.f32 0.0, %v1300
          %v1302 = vpop.f32.mrb[0].mxu0
          %1303 = vmatprep.mubr.f32.mxu0 0.0
          %1304 = vmatmul.mubr.f32.gmra.mrb[0].mxu0 %v1176
          %v1305 = vpop.f32.mrb[0].mxu0
          %v1306 = vadd.f32 0.0, %v1305
          %v1307 = vpop.f32.mrb[0].mxu0
          %1308 = vmatprep.mubr.f32.mxu0 0.0
          %1309 = vmatmul.mubr.f32.gmra.mrb[0].mxu0 %v1179
          %v1310 = vpop.f32.mrb[0].mxu0
          %v1311 = vadd.f32 0.0, %v1310
          %v1312 = vpop.f32.mrb[0].mxu0
          %1313 = vmatprep.mubr.f32.mxu0 0.0
          %1314 = vmatmul.mubr.f32.gmra.mrb[0].mxu0 %v1182
          %v1315 = vpop.f32.mrb[0].mxu0
          %v1316 = vadd.f32 0.0, %v1315
          %v1317 = vpop.f32.mrb[0].mxu0
          %1318 = vmatprep.mubr.f32.mxu0 0.0
          %1319 = vmatmul.mubr.f32.gmra.mrb[0].mxu0 %v1185
          %v1320 = vpop.f32.mrb[0].mxu0
          %v1321 = vadd.f32 0.0, %v1320
          %v1322 = vpop.f32.mrb[0].mxu0
          %1323 = vmatprep.mubr.f32.mxu0 0.0
          %1324 = vmatmul.mubr.f32.gmra.mrb[0].mxu0 %v1188
          %v1325 = vpop.f32.mrb[0].mxu0
          %v1326 = vadd.f32 0.0, %v1325
          %v1327 = vpop.f32.mrb[0].mxu0
          %1328 = vmatprep.mubr.f32.mxu0 0.0
          %1329 = vmatmul.mubr.f32.gmra.mrb[0].mxu0 %v1191
          %v1330 = vpop.f32.mrb[0].mxu0
          %v1331 = vadd.f32 0.0, %v1330
          %v1332 = vpop.f32.mrb[0].mxu0
          %1333 = vmatprep.mubr.f32.mxu0 0.0
          %1334 = vmatmul.mubr.f32.gmra.mrb[0].mxu0 %v1194
          %v1335 = vpop.f32.mrb[0].mxu0
          %v1336 = vadd.f32 0.0, %v1335
          %v1337 = vpop.f32.mrb[0].mxu0
          %1338 = vmatprep.mubr.f32.mxu0 0.0
          %1339 = vmatmul.mubr.f32.gmra.mrb[0].mxu0 %v1197
          %v1340 = vpop.f32.mrb[0].mxu0
          %v1341 = vadd.f32 0.0, %v1340
          %v1342 = vpop.f32.mrb[0].mxu0
          %1343 = vdwg.mxu0
          %vm1344 = vcmask 523264
          %v1346 = vsel %vm1344, %v1123, 0
          %v1349 = vsel %vm1344, %v1124, 0
          %v1352 = vsel %vm1344, %v1125, 0
          %v1355 = vsel %vm1344, %v1126, 0
          %v1358 = vsel %vm1344, %v1127, 0
          %v1361 = vsel %vm1344, %v1128, 0
          %v1364 = vsel %vm1344, %v1129, 0
          %v1367 = vsel %vm1344, %v1130, 0
          %v1370 = vsel %vm1344, %v1131, 0
          %v1373 = vsel %vm1344, %v1132, 0
          %v1376 = vsel %vm1344, %v1133, 0
          %v1379 = vsel %vm1344, %v1134, 0
          %v1382 = vsel %vm1344, %v1135, 0
          %v1385 = vsel %vm1344, %v1136, 0
          %v1388 = vsel %vm1344, %v1137, 0
          %v1391 = vsel %vm1344, %v1138, 0
          %1393 = vmatprep.subr.mxu0 0.0
          %1394 = vmatpush1.msra.mxu0 %v1139
          %1395 = vmatprep.subr.mxu0 0.0
          %1396 = vmatpush1.msra.mxu0 %v1140
          %1397 = vmatprep.subr.mxu0 0.0
          %1398 = vmatpush1.msra.mxu0 %v1141
          %1399 = vmatprep.subr.mxu0 0.0
          %1400 = vmatpush1.msra.mxu0 %v1142
          %1401 = vmatprep.subr.mxu0 0.0
          %1402 = vmatpush1.msra.mxu0 %v1143
          %1403 = vmatprep.subr.mxu0 0.0
          %1404 = vmatpush1.msra.mxu0 %v1144
          %1405 = vmatprep.subr.mxu0 0.0
          %1406 = vmatpush1.msra.mxu0 %v1145
          %1407 = vmatprep.subr.mxu0 0.0
          %1408 = vmatpush1.msra.mxu0 %v1146
          %1409 = vmatprep.subr.mxu0 0.0
          %1410 = vmatpush1.msra.mxu0 0.0
          %1411 = vmatprep.subr.mxu0 0.0
          %1412 = vmatpush1.msra.mxu0 0.0
          %1413 = vmatprep.subr.mxu0 0.0
          %1414 = vmatpush1.msra.mxu0 0.0
          %1415 = vmatprep.subr.mxu0 0.0
          %1416 = vmatpush1.msra.mxu0 0.0
          %1417 = vmatprep.subr.mxu0 0.0
          %1418 = vmatpush1.msra.mxu0 0.0
          %1419 = vmatprep.subr.mxu0 0.0
          %1420 = vmatpush1.msra.mxu0 0.0
          %1421 = vmatprep.subr.mxu0 0.0
          %1422 = vmatpush1.msra.mxu0 0.0
          %1423 = vmatprep.subr.mxu0 0.0
          %1424 = vmatpush1.msra.mxu0 0.0
          %1425 = vmatprep.subr.mxu0 0.0
          %1426 = vmatpush1.msra.mxu0 0.0
          %1427 = vmatprep.subr.mxu0 0.0
          %1428 = vmatpush1.msra.mxu0 0.0
          %1429 = vmatprep.subr.mxu0 0.0
          %1430 = vmatpush1.msra.mxu0 0.0
          %1431 = vmatprep.subr.mxu0 0.0
          %1432 = vmatpush1.msra.mxu0 0.0
          %1433 = vmatprep.subr.mxu0 0.0
          %1434 = vmatpush1.msra.mxu0 0.0
          %1435 = vmatprep.subr.mxu0 0.0
          %1436 = vmatpush1.msra.mxu0 0.0
          %1437 = vmatprep.subr.mxu0 0.0
          %1438 = vmatpush1.msra.mxu0 0.0
          %1439 = vmatprep.subr.mxu0 0.0
          %1440 = vmatpush1.msra.mxu0 0.0
          %1441 = vmatprep.subr.mxu0 0.0
          %1442 = vmatpush1.msra.mxu0 0.0
          %1443 = vmatprep.subr.mxu0 0.0
          %1444 = vmatpush1.msra.mxu0 0.0
          %1445 = vmatprep.subr.mxu0 0.0
          %1446 = vmatpush1.msra.mxu0 0.0
          %1447 = vmatprep.subr.mxu0 0.0
          %1448 = vmatpush1.msra.mxu0 0.0
          %1449 = vmatprep.subr.mxu0 0.0
          %1450 = vmatpush1.msra.mxu0 0.0
          %1451 = vmatprep.subr.mxu0 0.0
          %1452 = vmatpush1.msra.mxu0 0.0
          %1453 = vmatprep.subr.mxu0 0.0
          %1454 = vmatpush1.msra.mxu0 0.0
          %1455 = vmatprep.subr.mxu0 0.0
          %1456 = vmatpush1.msra.mxu0 0.0
          %1457 = vmatprep.mubr.f32.mxu0 0.0
          %1458 = vmatmul.mubr.f32.gmra.mrb[0].mxu0 %v1346
          %v1459 = vpop.f32.mrb[0].mxu0
          %v1460 = vadd.f32 %v1266, %v1459
          %v1461 = vpop.f32.mrb[0].mxu0
          %1462 = vmatprep.mubr.f32.mxu0 0.0
          %1463 = vmatmul.mubr.f32.gmra.mrb[0].mxu0 %v1349
          %v1464 = vpop.f32.mrb[0].mxu0
          %v1465 = vadd.f32 %v1271, %v1464
          %v1466 = vpop.f32.mrb[0].mxu0
          %1467 = vmatprep.mubr.f32.mxu0 0.0
          %1468 = vmatmul.mubr.f32.gmra.mrb[0].mxu0 %v1352
          %v1469 = vpop.f32.mrb[0].mxu0
          %v1470 = vadd.f32 %v1276, %v1469
          %v1471 = vpop.f32.mrb[0].mxu0
          %1472 = vmatprep.mubr.f32.mxu0 0.0
          %1473 = vmatmul.mubr.f32.gmra.mrb[0].mxu0 %v1355
          %v1474 = vpop.f32.mrb[0].mxu0
          %v1475 = vadd.f32 %v1281, %v1474
          %v1476 = vpop.f32.mrb[0].mxu0
          %1477 = vmatprep.mubr.f32.mxu0 0.0
          %1478 = vmatmul.mubr.f32.gmra.mrb[0].mxu0 %v1358
          %v1479 = vpop.f32.mrb[0].mxu0
          %v1480 = vadd.f32 %v1286, %v1479
          %v1481 = vpop.f32.mrb[0].mxu0
          %1482 = vmatprep.mubr.f32.mxu0 0.0
          %1483 = vmatmul.mubr.f32.gmra.mrb[0].mxu0 %v1361
          %v1484 = vpop.f32.mrb[0].mxu0
          %v1485 = vadd.f32 %v1291, %v1484
          %v1486 = vpop.f32.mrb[0].mxu0
          %1487 = vmatprep.mubr.f32.mxu0 0.0
          %1488 = vmatmul.mubr.f32.gmra.mrb[0].mxu0 %v1364
          %v1489 = vpop.f32.mrb[0].mxu0
          %v1490 = vadd.f32 %v1296, %v1489
          %v1491 = vpop.f32.mrb[0].mxu0
          %1492 = vmatprep.mubr.f32.mxu0 0.0
          %1493 = vmatmul.mubr.f32.gmra.mrb[0].mxu0 %v1367
          %v1494 = vpop.f32.mrb[0].mxu0
          %v1495 = vadd.f32 %v1301, %v1494
          %v1496 = vpop.f32.mrb[0].mxu0
          %1497 = vmatprep.mubr.f32.mxu0 0.0
          %1498 = vmatmul.mubr.f32.gmra.mrb[0].mxu0 %v1370
          %v1499 = vpop.f32.mrb[0].mxu0
          %v1500 = vadd.f32 %v1306, %v1499
          %v1501 = vpop.f32.mrb[0].mxu0
          %1502 = vmatprep.mubr.f32.mxu0 0.0
          %1503 = vmatmul.mubr.f32.gmra.mrb[0].mxu0 %v1373
          %v1504 = vpop.f32.mrb[0].mxu0
          %v1505 = vadd.f32 %v1311, %v1504
          %v1506 = vpop.f32.mrb[0].mxu0
          %1507 = vmatprep.mubr.f32.mxu0 0.0
          %1508 = vmatmul.mubr.f32.gmra.mrb[0].mxu0 %v1376
          %v1509 = vpop.f32.mrb[0].mxu0
          %v1510 = vadd.f32 %v1316, %v1509
          %v1511 = vpop.f32.mrb[0].mxu0
          %1512 = vmatprep.mubr.f32.mxu0 0.0
          %1513 = vmatmul.mubr.f32.gmra.mrb[0].mxu0 %v1379
          %v1514 = vpop.f32.mrb[0].mxu0
          %v1515 = vadd.f32 %v1321, %v1514
          %v1516 = vpop.f32.mrb[0].mxu0
          %1517 = vmatprep.mubr.f32.mxu0 0.0
          %1518 = vmatmul.mubr.f32.gmra.mrb[0].mxu0 %v1382
          %v1519 = vpop.f32.mrb[0].mxu0
          %v1520 = vadd.f32 %v1326, %v1519
          %v1521 = vpop.f32.mrb[0].mxu0
          %1522 = vmatprep.mubr.f32.mxu0 0.0
          %1523 = vmatmul.mubr.f32.gmra.mrb[0].mxu0 %v1385
          %v1524 = vpop.f32.mrb[0].mxu0
          %v1525 = vadd.f32 %v1331, %v1524
          %v1526 = vpop.f32.mrb[0].mxu0
          %1527 = vmatprep.mubr.f32.mxu0 0.0
          %1528 = vmatmul.mubr.f32.gmra.mrb[0].mxu0 %v1388
          %v1529 = vpop.f32.mrb[0].mxu0
          %v1530 = vadd.f32 %v1336, %v1529
          %v1531 = vpop.f32.mrb[0].mxu0
          %1532 = vmatprep.mubr.f32.mxu0 0.0
          %1533 = vmatmul.mubr.f32.gmra.mrb[0].mxu0 %v1391
          %v1534 = vpop.f32.mrb[0].mxu0
          %v1535 = vadd.f32 %v1341, %v1534
          %v1536 = vpop.f32.mrb[0].mxu0
          %1537 = vdwg.mxu0
          %v1538 = vld [vmem:[%s5] sm:$0x1]
          %v1540 = vlaneseq
          %v1541 = vshrl.u32 %v1540, 7
          %v1542 = vsub.s32 0, %v1541
          %v1543 = vrot.slane %v1538, %v1542
          %v1545 = vadd.f32 %v1460, %v1543
          %v1546 = vadd.f32 %v1465, %v1543
          %v1547 = vadd.f32 %v1470, %v1543
          %v1548 = vadd.f32 %v1475, %v1543
          %v1549 = vadd.f32 %v1480, %v1543
          %v1550 = vadd.f32 %v1485, %v1543
          %v1551 = vadd.f32 %v1490, %v1543
          %v1552 = vadd.f32 %v1495, %v1543
          %v1553 = vadd.f32 %v1500, %v1543
          %v1554 = vadd.f32 %v1505, %v1543
          %v1555 = vadd.f32 %v1510, %v1543
          %v1556 = vadd.f32 %v1515, %v1543
          %v1557 = vadd.f32 %v1520, %v1543
          %v1558 = vadd.f32 %v1525, %v1543
          %v1559 = vadd.f32 %v1530, %v1543
          %v1560 = vadd.f32 %v1535, %v1543
          %v1561 = vld [vmem:[%s6] sm:$0xff]
          %v1562 = vld [vmem:[%s6 + $0x8] sm:$0xff]
          %v1563 = vld [vmem:[%s6 + $0x10] sm:$0xff]
          %v1564 = vld [vmem:[%s6 + $0x18] sm:$0xff]
          %v1565 = vld [vmem:[%s7] sm:$0x1]
          %v1567 = vlaneseq
          %v1568 = vshrl.u32 %v1567, 7
          %v1569 = vsub.s32 0, %v1568
          %v1570 = vrot.slane %v1565, %v1569
          %1572 = vmatprep.subr.mxu0 0.0
          %1573 = vmatpush1.msra.mxu0 %v1561
          %1574 = vmatprep.subr.mxu0 0.0
          %1575 = vmatpush1.msra.mxu0 %v1562
          %1576 = vmatprep.subr.mxu0 0.0
          %1577 = vmatpush1.msra.mxu0 %v1563
          %1578 = vmatprep.subr.mxu0 0.0
          %1579 = vmatpush1.msra.mxu0 %v1564
          %1580 = vmatprep.subr.mxu0 0.0
          %1581 = vmatpush1.msra.mxu0 0.0
          %1582 = vmatprep.subr.mxu0 0.0
          %1583 = vmatpush1.msra.mxu0 0.0
          %1584 = vmatprep.subr.mxu0 0.0
          %1585 = vmatpush1.msra.mxu0 0.0
          %1586 = vmatprep.subr.mxu0 0.0
          %1587 = vmatpush1.msra.mxu0 0.0
          %1588 = vmatprep.subr.mxu0 0.0
          %1589 = vmatpush1.msra.mxu0 0.0
          %1590 = vmatprep.subr.mxu0 0.0
          %1591 = vmatpush1.msra.mxu0 0.0
          %1592 = vmatprep.subr.mxu0 0.0
          %1593 = vmatpush1.msra.mxu0 0.0
          %1594 = vmatprep.subr.mxu0 0.0
          %1595 = vmatpush1.msra.mxu0 0.0
          %1596 = vmatprep.subr.mxu0 0.0
          %1597 = vmatpush1.msra.mxu0 0.0
          %1598 = vmatprep.subr.mxu0 0.0
          %1599 = vmatpush1.msra.mxu0 0.0
          %1600 = vmatprep.subr.mxu0 0.0
          %1601 = vmatpush1.msra.mxu0 0.0
          %1602 = vmatprep.subr.mxu0 0.0
          %1603 = vmatpush1.msra.mxu0 0.0
          %1604 = vmatprep.subr.mxu0 0.0
          %1605 = vmatpush1.msra.mxu0 0.0
          %1606 = vmatprep.subr.mxu0 0.0
          %1607 = vmatpush1.msra.mxu0 0.0
          %1608 = vmatprep.subr.mxu0 0.0
          %1609 = vmatpush1.msra.mxu0 0.0
          %1610 = vmatprep.subr.mxu0 0.0
          %1611 = vmatpush1.msra.mxu0 0.0
          %1612 = vmatprep.subr.mxu0 0.0
          %1613 = vmatpush1.msra.mxu0 0.0
          %1614 = vmatprep.subr.mxu0 0.0
          %1615 = vmatpush1.msra.mxu0 0.0
          %1616 = vmatprep.subr.mxu0 0.0
          %1617 = vmatpush1.msra.mxu0 0.0
          %1618 = vmatprep.subr.mxu0 0.0
          %1619 = vmatpush1.msra.mxu0 0.0
          %1620 = vmatprep.subr.mxu0 0.0
          %1621 = vmatpush1.msra.mxu0 0.0
          %1622 = vmatprep.subr.mxu0 0.0
          %1623 = vmatpush1.msra.mxu0 0.0
          %1624 = vmatprep.subr.mxu0 0.0
          %1625 = vmatpush1.msra.mxu0 0.0
          %1626 = vmatprep.subr.mxu0 0.0
          %1627 = vmatpush1.msra.mxu0 0.0
          %1628 = vmatprep.subr.mxu0 0.0
          %1629 = vmatpush1.msra.mxu0 0.0
          %1630 = vmatprep.subr.mxu0 0.0
          %1631 = vmatpush1.msra.mxu0 0.0
          %1632 = vmatprep.subr.mxu0 0.0
          %1633 = vmatpush1.msra.mxu0 0.0
          %1634 = vmatprep.subr.mxu0 0.0
          %1635 = vmatpush1.msra.mxu0 0.0
          %1636 = vmatprep.mubr.f32.mxu0 0.0
          %1637 = vmatmul.mubr.f32.gmra.mrb[0].mxu0 %v1152
          %v1638 = vpop.f32.mrb[0].mxu0
          %v1639 = vadd.f32 %v1570, %v1638
          %v1640 = vpop.f32.mrb[0].mxu0
          %1641 = vmatprep.mubr.f32.mxu0 0.0
          %1642 = vmatmul.mubr.f32.gmra.mrb[0].mxu0 %v1155
          %v1643 = vpop.f32.mrb[0].mxu0
          %v1644 = vadd.f32 %v1570, %v1643
          %v1645 = vpop.f32.mrb[0].mxu0
          %1646 = vmatprep.mubr.f32.mxu0 0.0
          %1647 = vmatmul.mubr.f32.gmra.mrb[0].mxu0 %v1158
          %v1648 = vpop.f32.mrb[0].mxu0
          %v1649 = vadd.f32 %v1570, %v1648
          %v1650 = vpop.f32.mrb[0].mxu0
          %1651 = vmatprep.mubr.f32.mxu0 0.0
          %1652 = vmatmul.mubr.f32.gmra.mrb[0].mxu0 %v1161
          %v1653 = vpop.f32.mrb[0].mxu0
          %v1654 = vadd.f32 %v1570, %v1653
          %v1655 = vpop.f32.mrb[0].mxu0
          %1656 = vmatprep.mubr.f32.mxu0 0.0
          %1657 = vmatmul.mubr.f32.gmra.mrb[0].mxu0 %v1164
          %v1658 = vpop.f32.mrb[0].mxu0
          %v1659 = vadd.f32 %v1570, %v1658
          %v1660 = vpop.f32.mrb[0].mxu0
          %1661 = vmatprep.mubr.f32.mxu0 0.0
          %1662 = vmatmul.mubr.f32.gmra.mrb[0].mxu0 %v1167
          %v1663 = vpop.f32.mrb[0].mxu0
          %v1664 = vadd.f32 %v1570, %v1663
          %v1665 = vpop.f32.mrb[0].mxu0
          %1666 = vmatprep.mubr.f32.mxu0 0.0
          %1667 = vmatmul.mubr.f32.gmra.mrb[0].mxu0 %v1170
          %v1668 = vpop.f32.mrb[0].mxu0
          %v1669 = vadd.f32 %v1570, %v1668
          %v1670 = vpop.f32.mrb[0].mxu0
          %1671 = vmatprep.mubr.f32.mxu0 0.0
          %1672 = vmatmul.mubr.f32.gmra.mrb[0].mxu0 %v1173
          %v1673 = vpop.f32.mrb[0].mxu0
          %v1674 = vadd.f32 %v1570, %v1673
          %v1675 = vpop.f32.mrb[0].mxu0
          %1676 = vmatprep.mubr.f32.mxu0 0.0
          %1677 = vmatmul.mubr.f32.gmra.mrb[0].mxu0 %v1176
          %v1678 = vpop.f32.mrb[0].mxu0
          %v1679 = vadd.f32 %v1570, %v1678
          %v1680 = vpop.f32.mrb[0].mxu0
          %1681 = vmatprep.mubr.f32.mxu0 0.0
          %1682 = vmatmul.mubr.f32.gmra.mrb[0].mxu0 %v1179
          %v1683 = vpop.f32.mrb[0].mxu0
          %v1684 = vadd.f32 %v1570, %v1683
          %v1685 = vpop.f32.mrb[0].mxu0
          %1686 = vmatprep.mubr.f32.mxu0 0.0
          %1687 = vmatmul.mubr.f32.gmra.mrb[0].mxu0 %v1182
          %v1688 = vpop.f32.mrb[0].mxu0
          %v1689 = vadd.f32 %v1570, %v1688
          %v1690 = vpop.f32.mrb[0].mxu0
          %1691 = vmatprep.mubr.f32.mxu0 0.0
          %1692 = vmatmul.mubr.f32.gmra.mrb[0].mxu0 %v1185
          %v1693 = vpop.f32.mrb[0].mxu0
          %v1694 = vadd.f32 %v1570, %v1693
          %v1695 = vpop.f32.mrb[0].mxu0
          %1696 = vmatprep.mubr.f32.mxu0 0.0
          %1697 = vmatmul.mubr.f32.gmra.mrb[0].mxu0 %v1188
          %v1698 = vpop.f32.mrb[0].mxu0
          %v1699 = vadd.f32 %v1570, %v1698
          %v1700 = vpop.f32.mrb[0].mxu0
          %1701 = vmatprep.mubr.f32.mxu0 0.0
          %1702 = vmatmul.mubr.f32.gmra.mrb[0].mxu0 %v1191
          %v1703 = vpop.f32.mrb[0].mxu0
          %v1704 = vadd.f32 %v1570, %v1703
          %v1705 = vpop.f32.mrb[0].mxu0
          %1706 = vmatprep.mubr.f32.mxu0 0.0
          %1707 = vmatmul.mubr.f32.gmra.mrb[0].mxu0 %v1194
          %v1708 = vpop.f32.mrb[0].mxu0
          %v1709 = vadd.f32 %v1570, %v1708
          %v1710 = vpop.f32.mrb[0].mxu0
          %1711 = vmatprep.mubr.f32.mxu0 0.0
          %1712 = vmatmul.mubr.f32.gmra.mrb[0].mxu0 %v1197
          %v1713 = vpop.f32.mrb[0].mxu0
          %v1714 = vadd.f32 %v1570, %v1713
          %v1715 = vpop.f32.mrb[0].mxu0
          %1716 = vdwg.mxu0
          %v1717 = vxor.u32 %v1545, 2147483648
          %v1718 = vxor.u32 %v1546, 2147483648
          %v1719 = vxor.u32 %v1547, 2147483648
          %v1720 = vxor.u32 %v1548, 2147483648
          %v1721 = vxor.u32 %v1549, 2147483648
          %v1722 = vxor.u32 %v1550, 2147483648
          %v1723 = vxor.u32 %v1551, 2147483648
          %v1724 = vxor.u32 %v1552, 2147483648
          %v1725 = vxor.u32 %v1553, 2147483648
          %v1726 = vxor.u32 %v1554, 2147483648
          %v1727 = vxor.u32 %v1555, 2147483648
          %v1728 = vxor.u32 %v1556, 2147483648
          %v1729 = vxor.u32 %v1557, 2147483648
          %v1730 = vxor.u32 %v1558, 2147483648
          %v1731 = vxor.u32 %v1559, 2147483648
          %v1732 = vxor.u32 %v1560, 2147483648
          %v1733 = vmul.f32 %v1717, 1.442695
          %v1734 = vpow.pop %v1733
          %v1735 = vmul.f32 %v1718, 1.442695
          %v1736 = vpow.pop %v1735
          %v1737 = vmul.f32 %v1719, 1.442695
          %v1738 = vpow.pop %v1737
          %v1739 = vmul.f32 %v1720, 1.442695
          %v1740 = vpow.pop %v1739
          %v1741 = vmul.f32 %v1721, 1.442695
          %v1742 = vpow.pop %v1741
          %v1743 = vmul.f32 %v1722, 1.442695
          %v1744 = vpow.pop %v1743
          %v1745 = vmul.f32 %v1723, 1.442695
          %v1746 = vpow.pop %v1745
          %v1747 = vmul.f32 %v1724, 1.442695
          %v1748 = vpow.pop %v1747
          %v1749 = vmul.f32 %v1725, 1.442695
          %v1750 = vpow.pop %v1749
          %v1751 = vmul.f32 %v1726, 1.442695
          %v1752 = vpow.pop %v1751
          %v1753 = vmul.f32 %v1727, 1.442695
          %v1754 = vpow.pop %v1753
          %v1755 = vmul.f32 %v1728, 1.442695
          %v1756 = vpow.pop %v1755
          %v1757 = vmul.f32 %v1729, 1.442695
          %v1758 = vpow.pop %v1757
          %v1759 = vmul.f32 %v1730, 1.442695
          %v1760 = vpow.pop %v1759
          %v1761 = vmul.f32 %v1731, 1.442695
          %v1762 = vpow.pop %v1761
          %v1763 = vmul.f32 %v1732, 1.442695
          %v1764 = vpow.pop %v1763
          %v1765 = vadd.f32 %v1734, 1.0
          %v1766 = vadd.f32 %v1736, 1.0
          %v1767 = vadd.f32 %v1738, 1.0
          %v1768 = vadd.f32 %v1740, 1.0
          %v1769 = vadd.f32 %v1742, 1.0
          %v1770 = vadd.f32 %v1744, 1.0
          %v1771 = vadd.f32 %v1746, 1.0
          %v1772 = vadd.f32 %v1748, 1.0
          %v1773 = vadd.f32 %v1750, 1.0
          %v1774 = vadd.f32 %v1752, 1.0
          %v1775 = vadd.f32 %v1754, 1.0
          %v1776 = vadd.f32 %v1756, 1.0
          %v1777 = vadd.f32 %v1758, 1.0
          %v1778 = vadd.f32 %v1760, 1.0
          %v1779 = vadd.f32 %v1762, 1.0
          %v1780 = vadd.f32 %v1764, 1.0
          %v1781 = vrcp.pop %v1765
          %v1782 = vmul.f32 1.0, %v1781
          %v1783 = vrcp.pop %v1766
          %v1784 = vmul.f32 1.0, %v1783
          %v1785 = vrcp.pop %v1767
          %v1786 = vmul.f32 1.0, %v1785
          %v1787 = vrcp.pop %v1768
          %v1788 = vmul.f32 1.0, %v1787
          %v1789 = vrcp.pop %v1769
          %v1790 = vmul.f32 1.0, %v1789
          %v1791 = vrcp.pop %v1770
          %v1792 = vmul.f32 1.0, %v1791
          %v1793 = vrcp.pop %v1771
          %v1794 = vmul.f32 1.0, %v1793
          %v1795 = vrcp.pop %v1772
          %v1796 = vmul.f32 1.0, %v1795
          %v1797 = vrcp.pop %v1773
          %v1798 = vmul.f32 1.0, %v1797
          %v1799 = vrcp.pop %v1774
          %v1800 = vmul.f32 1.0, %v1799
          %v1801 = vrcp.pop %v1775
          %v1802 = vmul.f32 1.0, %v1801
          %v1803 = vrcp.pop %v1776
          %v1804 = vmul.f32 1.0, %v1803
          %v1805 = vrcp.pop %v1777
          %v1806 = vmul.f32 1.0, %v1805
          %v1807 = vrcp.pop %v1778
          %v1808 = vmul.f32 1.0, %v1807
          %v1809 = vrcp.pop %v1779
          %v1810 = vmul.f32 1.0, %v1809
          %v1811 = vrcp.pop %v1780
          %v1812 = vmul.f32 1.0, %v1811
          %v1813 = vmul.f32 %v1545, %v1782
          %v1814 = vmul.f32 %v1546, %v1784
          %v1815 = vmul.f32 %v1547, %v1786
          %v1816 = vmul.f32 %v1548, %v1788
          %v1817 = vmul.f32 %v1549, %v1790
          %v1818 = vmul.f32 %v1550, %v1792
          %v1819 = vmul.f32 %v1551, %v1794
          %v1820 = vmul.f32 %v1552, %v1796
          %v1821 = vmul.f32 %v1553, %v1798
          %v1822 = vmul.f32 %v1554, %v1800
          %v1823 = vmul.f32 %v1555, %v1802
          %v1824 = vmul.f32 %v1556, %v1804
          %v1825 = vmul.f32 %v1557, %v1806
          %v1826 = vmul.f32 %v1558, %v1808
          %v1827 = vmul.f32 %v1559, %v1810
          %v1828 = vmul.f32 %v1560, %v1812
          %v1829 = vld [vmem:[%s8] sm:$0x1]
          %v1830 = vld [vmem:[%s9] sm:$0x1]
          %v1831 = vsel %vm1344, %v1813, 0.0
          %1832 = vadd.xlane.f32.xlu0 %v1831
          %v1833 = vpop.xlane.xlu0 %1832
          %v1834 = vsel %vm1344, %v1814, 0.0
          %1835 = vadd.xlane.f32.xlu0 %v1834
          %v1836 = vpop.xlane.xlu0 %1835
          %v1837 = vsel %vm1344, %v1815, 0.0
          %1838 = vadd.xlane.f32.xlu0 %v1837
          %v1839 = vpop.xlane.xlu0 %1838
          %v1840 = vsel %vm1344, %v1816, 0.0
          %1841 = vadd.xlane.f32.xlu0 %v1840
          %v1842 = vpop.xlane.xlu0 %1841
          %v1843 = vsel %vm1344, %v1817, 0.0
          %1844 = vadd.xlane.f32.xlu0 %v1843
          %v1845 = vpop.xlane.xlu0 %1844
          %v1846 = vsel %vm1344, %v1818, 0.0
          %1847 = vadd.xlane.f32.xlu0 %v1846
          %v1848 = vpop.xlane.xlu0 %1847
          %v1849 = vsel %vm1344, %v1819, 0.0
          %1850 = vadd.xlane.f32.xlu0 %v1849
          %v1851 = vpop.xlane.xlu0 %1850
          %v1852 = vsel %vm1344, %v1820, 0.0
          %1853 = vadd.xlane.f32.xlu0 %v1852
          %v1854 = vpop.xlane.xlu0 %1853
          %v1855 = vsel %vm1344, %v1821, 0.0
          %1856 = vadd.xlane.f32.xlu0 %v1855
          %v1857 = vpop.xlane.xlu0 %1856
          %v1858 = vsel %vm1344, %v1822, 0.0
          %1859 = vadd.xlane.f32.xlu0 %v1858
          %v1860 = vpop.xlane.xlu0 %1859
          %v1861 = vsel %vm1344, %v1823, 0.0
          %1862 = vadd.xlane.f32.xlu0 %v1861
          %v1863 = vpop.xlane.xlu0 %1862
          %v1864 = vsel %vm1344, %v1824, 0.0
          %1865 = vadd.xlane.f32.xlu0 %v1864
          %v1866 = vpop.xlane.xlu0 %1865
          %v1867 = vsel %vm1344, %v1825, 0.0
          %1868 = vadd.xlane.f32.xlu0 %v1867
          %v1869 = vpop.xlane.xlu0 %1868
          %v1870 = vsel %vm1344, %v1826, 0.0
          %1871 = vadd.xlane.f32.xlu0 %v1870
          %v1872 = vpop.xlane.xlu0 %1871
          %v1873 = vsel %vm1344, %v1827, 0.0
          %1874 = vadd.xlane.f32.xlu0 %v1873
          %v1875 = vpop.xlane.xlu0 %1874
          %v1876 = vsel %vm1344, %v1828, 0.0
          %1877 = vadd.xlane.f32.xlu0 %v1876
          %v1878 = vpop.xlane.xlu0 %1877
          %v1879 = vrcp.pop 64.0
          %v1880 = vmul.f32 %v1833, %v1879
          %v1881 = vmul.f32 %v1836, %v1879
          %v1882 = vmul.f32 %v1839, %v1879
          %v1883 = vmul.f32 %v1842, %v1879
          %v1884 = vmul.f32 %v1845, %v1879
          %v1885 = vmul.f32 %v1848, %v1879
          %v1886 = vmul.f32 %v1851, %v1879
          %v1887 = vmul.f32 %v1854, %v1879
          %v1888 = vmul.f32 %v1857, %v1879
          %v1889 = vmul.f32 %v1860, %v1879
          %v1890 = vmul.f32 %v1863, %v1879
          %v1891 = vmul.f32 %v1866, %v1879
          %v1892 = vmul.f32 %v1869, %v1879
          %v1893 = vmul.f32 %v1872, %v1879
          %v1894 = vmul.f32 %v1875, %v1879
          %v1895 = vmul.f32 %v1878, %v1879
          %v1896 = vsub.f32 %v1813, %v1880
          %v1897 = vsub.f32 %v1814, %v1881
          %v1898 = vsub.f32 %v1815, %v1882
          %v1899 = vsub.f32 %v1816, %v1883
          %v1900 = vsub.f32 %v1817, %v1884
          %v1901 = vsub.f32 %v1818, %v1885
          %v1902 = vsub.f32 %v1819, %v1886
          %v1903 = vsub.f32 %v1820, %v1887
          %v1904 = vsub.f32 %v1821, %v1888
          %v1905 = vsub.f32 %v1822, %v1889
          %v1906 = vsub.f32 %v1823, %v1890
          %v1907 = vsub.f32 %v1824, %v1891
          %v1908 = vsub.f32 %v1825, %v1892
          %v1909 = vsub.f32 %v1826, %v1893
          %v1910 = vsub.f32 %v1827, %v1894
          %v1911 = vsub.f32 %v1828, %v1895
          %v1912 = vmul.f32 %v1896, %v1896
          %v1913 = vmul.f32 %v1897, %v1897
          %v1914 = vmul.f32 %v1898, %v1898
          %v1915 = vmul.f32 %v1899, %v1899
          %v1916 = vmul.f32 %v1900, %v1900
          %v1917 = vmul.f32 %v1901, %v1901
          %v1918 = vmul.f32 %v1902, %v1902
          %v1919 = vmul.f32 %v1903, %v1903
          %v1920 = vmul.f32 %v1904, %v1904
          %v1921 = vmul.f32 %v1905, %v1905
          %v1922 = vmul.f32 %v1906, %v1906
          %v1923 = vmul.f32 %v1907, %v1907
          %v1924 = vmul.f32 %v1908, %v1908
          %v1925 = vmul.f32 %v1909, %v1909
          %v1926 = vmul.f32 %v1910, %v1910
          %v1927 = vmul.f32 %v1911, %v1911
          %v1928 = vsel %vm1344, %v1912, 0.0
          %1929 = vadd.xlane.f32.xlu0 %v1928
          %v1930 = vpop.xlane.xlu0 %1929
          %v1931 = vsel %vm1344, %v1913, 0.0
          %1932 = vadd.xlane.f32.xlu0 %v1931
          %v1933 = vpop.xlane.xlu0 %1932
          %v1934 = vsel %vm1344, %v1914, 0.0
          %1935 = vadd.xlane.f32.xlu0 %v1934
          %v1936 = vpop.xlane.xlu0 %1935
          %v1937 = vsel %vm1344, %v1915, 0.0
          %1938 = vadd.xlane.f32.xlu0 %v1937
          %v1939 = vpop.xlane.xlu0 %1938
          %v1940 = vsel %vm1344, %v1916, 0.0
          %1941 = vadd.xlane.f32.xlu0 %v1940
          %v1942 = vpop.xlane.xlu0 %1941
          %v1943 = vsel %vm1344, %v1917, 0.0
          %1944 = vadd.xlane.f32.xlu0 %v1943
          %v1945 = vpop.xlane.xlu0 %1944
          %v1946 = vsel %vm1344, %v1918, 0.0
          %1947 = vadd.xlane.f32.xlu0 %v1946
          %v1948 = vpop.xlane.xlu0 %1947
          %v1949 = vsel %vm1344, %v1919, 0.0
          %1950 = vadd.xlane.f32.xlu0 %v1949
          %v1951 = vpop.xlane.xlu0 %1950
          %v1952 = vsel %vm1344, %v1920, 0.0
          %1953 = vadd.xlane.f32.xlu0 %v1952
          %v1954 = vpop.xlane.xlu0 %1953
          %v1955 = vsel %vm1344, %v1921, 0.0
          %1956 = vadd.xlane.f32.xlu0 %v1955
          %v1957 = vpop.xlane.xlu0 %1956
          %v1958 = vsel %vm1344, %v1922, 0.0
          %1959 = vadd.xlane.f32.xlu0 %v1958
          %v1960 = vpop.xlane.xlu0 %1959
          %v1961 = vsel %vm1344, %v1923, 0.0
          %1962 = vadd.xlane.f32.xlu0 %v1961
          %v1963 = vpop.xlane.xlu0 %1962
          %v1964 = vsel %vm1344, %v1924, 0.0
          %1965 = vadd.xlane.f32.xlu0 %v1964
          %v1966 = vpop.xlane.xlu0 %1965
          %v1967 = vsel %vm1344, %v1925, 0.0
          %1968 = vadd.xlane.f32.xlu0 %v1967
          %v1969 = vpop.xlane.xlu0 %1968
          %v1970 = vsel %vm1344, %v1926, 0.0
          %1971 = vadd.xlane.f32.xlu0 %v1970
          %v1972 = vpop.xlane.xlu0 %1971
          %v1973 = vsel %vm1344, %v1927, 0.0
          %1974 = vadd.xlane.f32.xlu0 %v1973
          %v1975 = vpop.xlane.xlu0 %1974
          %v1976 = vmul.f32 %v1930, %v1879
          %v1977 = vmul.f32 %v1933, %v1879
          %v1978 = vmul.f32 %v1936, %v1879
          %v1979 = vmul.f32 %v1939, %v1879
          %v1980 = vmul.f32 %v1942, %v1879
          %v1981 = vmul.f32 %v1945, %v1879
          %v1982 = vmul.f32 %v1948, %v1879
          %v1983 = vmul.f32 %v1951, %v1879
          %v1984 = vmul.f32 %v1954, %v1879
          %v1985 = vmul.f32 %v1957, %v1879
          %v1986 = vmul.f32 %v1960, %v1879
          %v1987 = vmul.f32 %v1963, %v1879
          %v1988 = vmul.f32 %v1966, %v1879
          %v1989 = vmul.f32 %v1969, %v1879
          %v1990 = vmul.f32 %v1972, %v1879
          %v1991 = vmul.f32 %v1975, %v1879
          %v1992 = vadd.f32 %v1976, 1e-05
          %v1993 = vadd.f32 %v1977, 1e-05
          %v1994 = vadd.f32 %v1978, 1e-05
          %v1995 = vadd.f32 %v1979, 1e-05
          %v1996 = vadd.f32 %v1980, 1e-05
          %v1997 = vadd.f32 %v1981, 1e-05
          %v1998 = vadd.f32 %v1982, 1e-05
          %v1999 = vadd.f32 %v1983, 1e-05
          %v2000 = vadd.f32 %v1984, 1e-05
          %v2001 = vadd.f32 %v1985, 1e-05
          %v2002 = vadd.f32 %v1986, 1e-05
          %v2003 = vadd.f32 %v1987, 1e-05
          %v2004 = vadd.f32 %v1988, 1e-05
          %v2005 = vadd.f32 %v1989, 1e-05
          %v2006 = vadd.f32 %v1990, 1e-05
          %v2007 = vadd.f32 %v1991, 1e-05
          %v2008 = vrsqrt.pop %v1992
          %v2009 = vrsqrt.pop %v1993
          %v2010 = vrsqrt.pop %v1994
          %v2011 = vrsqrt.pop %v1995
          %v2012 = vrsqrt.pop %v1996
          %v2013 = vrsqrt.pop %v1997
          %v2014 = vrsqrt.pop %v1998
          %v2015 = vrsqrt.pop %v1999
          %v2016 = vrsqrt.pop %v2000
          %v2017 = vrsqrt.pop %v2001
          %v2018 = vrsqrt.pop %v2002
          %v2019 = vrsqrt.pop %v2003
          %v2020 = vrsqrt.pop %v2004
          %v2021 = vrsqrt.pop %v2005
          %v2022 = vrsqrt.pop %v2006
          %v2023 = vrsqrt.pop %v2007
          %v2024 = vmul.f32 %v1896, %v2008
          %v2025 = vmul.f32 %v1897, %v2009
          %v2026 = vmul.f32 %v1898, %v2010
          %v2027 = vmul.f32 %v1899, %v2011
          %v2028 = vmul.f32 %v1900, %v2012
          %v2029 = vmul.f32 %v1901, %v2013
          %v2030 = vmul.f32 %v1902, %v2014
          %v2031 = vmul.f32 %v1903, %v2015
          %v2032 = vmul.f32 %v1904, %v2016
          %v2033 = vmul.f32 %v1905, %v2017
          %v2034 = vmul.f32 %v1906, %v2018
          %v2035 = vmul.f32 %v1907, %v2019
          %v2036 = vmul.f32 %v1908, %v2020
          %v2037 = vmul.f32 %v1909, %v2021
          %v2038 = vmul.f32 %v1910, %v2022
          %v2039 = vmul.f32 %v1911, %v2023
          %v2041 = vlaneseq
          %v2042 = vshrl.u32 %v2041, 7
          %v2043 = vsub.s32 0, %v2042
          %v2044 = vrot.slane %v1829, %v2043
          %v2046 = vmul.f32 %v2024, %v2044
          %v2047 = vmul.f32 %v2025, %v2044
          %v2048 = vmul.f32 %v2026, %v2044
          %v2049 = vmul.f32 %v2027, %v2044
          %v2050 = vmul.f32 %v2028, %v2044
          %v2051 = vmul.f32 %v2029, %v2044
          %v2052 = vmul.f32 %v2030, %v2044
          %v2053 = vmul.f32 %v2031, %v2044
          %v2054 = vmul.f32 %v2032, %v2044
          %v2055 = vmul.f32 %v2033, %v2044
          %v2056 = vmul.f32 %v2034, %v2044
          %v2057 = vmul.f32 %v2035, %v2044
          %v2058 = vmul.f32 %v2036, %v2044
          %v2059 = vmul.f32 %v2037, %v2044
          %v2060 = vmul.f32 %v2038, %v2044
          %v2061 = vmul.f32 %v2039, %v2044
          %v2063 = vlaneseq
          %v2064 = vshrl.u32 %v2063, 7
          %v2065 = vsub.s32 0, %v2064
          %v2066 = vrot.slane %v1830, %v2065
          %v2068 = vadd.f32 %v2046, %v2066
          %v2069 = vadd.f32 %v2047, %v2066
          %v2070 = vadd.f32 %v2048, %v2066
          %v2071 = vadd.f32 %v2049, %v2066
          %v2072 = vadd.f32 %v2050, %v2066
          %v2073 = vadd.f32 %v2051, %v2066
          %v2074 = vadd.f32 %v2052, %v2066
          %v2075 = vadd.f32 %v2053, %v2066
          %v2076 = vadd.f32 %v2054, %v2066
          %v2077 = vadd.f32 %v2055, %v2066
          %v2078 = vadd.f32 %v2056, %v2066
          %v2079 = vadd.f32 %v2057, %v2066
          %v2080 = vadd.f32 %v2058, %v2066
          %v2081 = vadd.f32 %v2059, %v2066
          %v2082 = vadd.f32 %v2060, %v2066
          %v2083 = vadd.f32 %v2061, %v2066
          %v2084 = vadd.f32 %v1639, %v2068
          %v2085 = vadd.f32 %v1644, %v2069
          %v2086 = vadd.f32 %v1649, %v2070
          %v2087 = vadd.f32 %v1654, %v2071
          %v2088 = vadd.f32 %v1659, %v2072
          %v2089 = vadd.f32 %v1664, %v2073
          %v2090 = vadd.f32 %v1669, %v2074
          %v2091 = vadd.f32 %v1674, %v2075
          %v2092 = vadd.f32 %v1679, %v2076
          %v2093 = vadd.f32 %v1684, %v2077
          %v2094 = vadd.f32 %v1689, %v2078
          %v2095 = vadd.f32 %v1694, %v2079
          %v2096 = vadd.f32 %v1699, %v2080
          %v2097 = vadd.f32 %v1704, %v2081
          %v2098 = vadd.f32 %v1709, %v2082
          %v2099 = vadd.f32 %v1714, %v2083
          %v2100 = vxor.u32 %v2084, 2147483648
          %v2101 = vxor.u32 %v2085, 2147483648
          %v2102 = vxor.u32 %v2086, 2147483648
          %v2103 = vxor.u32 %v2087, 2147483648
          %v2104 = vxor.u32 %v2088, 2147483648
          %v2105 = vxor.u32 %v2089, 2147483648
          %v2106 = vxor.u32 %v2090, 2147483648
          %v2107 = vxor.u32 %v2091, 2147483648
          %v2108 = vxor.u32 %v2092, 2147483648
          %v2109 = vxor.u32 %v2093, 2147483648
          %v2110 = vxor.u32 %v2094, 2147483648
          %v2111 = vxor.u32 %v2095, 2147483648
          %v2112 = vxor.u32 %v2096, 2147483648
          %v2113 = vxor.u32 %v2097, 2147483648
          %v2114 = vxor.u32 %v2098, 2147483648
          %v2115 = vxor.u32 %v2099, 2147483648
          %v2116 = vmul.f32 %v2100, 1.442695
          %v2117 = vpow.pop %v2116
          %v2118 = vmul.f32 %v2101, 1.442695
          %v2119 = vpow.pop %v2118
          %v2120 = vmul.f32 %v2102, 1.442695
          %v2121 = vpow.pop %v2120
          %v2122 = vmul.f32 %v2103, 1.442695
          %v2123 = vpow.pop %v2122
          %v2124 = vmul.f32 %v2104, 1.442695
          %v2125 = vpow.pop %v2124
          %v2126 = vmul.f32 %v2105, 1.442695
          %v2127 = vpow.pop %v2126
          %v2128 = vmul.f32 %v2106, 1.442695
          %v2129 = vpow.pop %v2128
          %v2130 = vmul.f32 %v2107, 1.442695
          %v2131 = vpow.pop %v2130
          %v2132 = vmul.f32 %v2108, 1.442695
          %v2133 = vpow.pop %v2132
          %v2134 = vmul.f32 %v2109, 1.442695
          %v2135 = vpow.pop %v2134
          %v2136 = vmul.f32 %v2110, 1.442695
          %v2137 = vpow.pop %v2136
          %v2138 = vmul.f32 %v2111, 1.442695
          %v2139 = vpow.pop %v2138
          %v2140 = vmul.f32 %v2112, 1.442695
          %v2141 = vpow.pop %v2140
          %v2142 = vmul.f32 %v2113, 1.442695
          %v2143 = vpow.pop %v2142
          %v2144 = vmul.f32 %v2114, 1.442695
          %v2145 = vpow.pop %v2144
          %v2146 = vmul.f32 %v2115, 1.442695
          %v2147 = vpow.pop %v2146
          %v2148 = vadd.f32 %v2117, 1.0
          %v2149 = vadd.f32 %v2119, 1.0
          %v2150 = vadd.f32 %v2121, 1.0
          %v2151 = vadd.f32 %v2123, 1.0
          %v2152 = vadd.f32 %v2125, 1.0
          %v2153 = vadd.f32 %v2127, 1.0
          %v2154 = vadd.f32 %v2129, 1.0
          %v2155 = vadd.f32 %v2131, 1.0
          %v2156 = vadd.f32 %v2133, 1.0
          %v2157 = vadd.f32 %v2135, 1.0
          %v2158 = vadd.f32 %v2137, 1.0
          %v2159 = vadd.f32 %v2139, 1.0
          %v2160 = vadd.f32 %v2141, 1.0
          %v2161 = vadd.f32 %v2143, 1.0
          %v2162 = vadd.f32 %v2145, 1.0
          %v2163 = vadd.f32 %v2147, 1.0
          %v2164 = vrcp.pop %v2148
          %v2165 = vmul.f32 1.0, %v2164
          %v2166 = vrcp.pop %v2149
          %v2167 = vmul.f32 1.0, %v2166
          %v2168 = vrcp.pop %v2150
          %v2169 = vmul.f32 1.0, %v2168
          %v2170 = vrcp.pop %v2151
          %v2171 = vmul.f32 1.0, %v2170
          %v2172 = vrcp.pop %v2152
          %v2173 = vmul.f32 1.0, %v2172
          %v2174 = vrcp.pop %v2153
          %v2175 = vmul.f32 1.0, %v2174
          %v2176 = vrcp.pop %v2154
          %v2177 = vmul.f32 1.0, %v2176
          %v2178 = vrcp.pop %v2155
          %v2179 = vmul.f32 1.0, %v2178
          %v2180 = vrcp.pop %v2156
          %v2181 = vmul.f32 1.0, %v2180
          %v2182 = vrcp.pop %v2157
          %v2183 = vmul.f32 1.0, %v2182
          %v2184 = vrcp.pop %v2158
          %v2185 = vmul.f32 1.0, %v2184
          %v2186 = vrcp.pop %v2159
          %v2187 = vmul.f32 1.0, %v2186
          %v2188 = vrcp.pop %v2160
          %v2189 = vmul.f32 1.0, %v2188
          %v2190 = vrcp.pop %v2161
          %v2191 = vmul.f32 1.0, %v2190
          %v2192 = vrcp.pop %v2162
          %v2193 = vmul.f32 1.0, %v2192
          %v2194 = vrcp.pop %v2163
          %v2195 = vmul.f32 1.0, %v2194
          %v2196 = vmul.f32 %v2084, %v2165
          %v2197 = vmul.f32 %v2085, %v2167
          %v2198 = vmul.f32 %v2086, %v2169
          %v2199 = vmul.f32 %v2087, %v2171
          %v2200 = vmul.f32 %v2088, %v2173
          %v2201 = vmul.f32 %v2089, %v2175
          %v2202 = vmul.f32 %v2090, %v2177
          %v2203 = vmul.f32 %v2091, %v2179
          %v2204 = vmul.f32 %v2092, %v2181
          %v2205 = vmul.f32 %v2093, %v2183
          %v2206 = vmul.f32 %v2094, %v2185
          %v2207 = vmul.f32 %v2095, %v2187
          %v2208 = vmul.f32 %v2096, %v2189
          %v2209 = vmul.f32 %v2097, %v2191
          %v2210 = vmul.f32 %v2098, %v2193
          %v2211 = vmul.f32 %v2099, %v2195
          %v2212 = vld [vmem:[%s10] sm:$0x1]
          %v2213 = vld [vmem:[%s11] sm:$0x1]
          %v2214 = vsel %vm1344, %v2196, 0.0
          %2215 = vadd.xlane.f32.xlu0 %v2214
          %v2216 = vpop.xlane.xlu0 %2215
          %v2217 = vsel %vm1344, %v2197, 0.0
          %2218 = vadd.xlane.f32.xlu0 %v2217
          %v2219 = vpop.xlane.xlu0 %2218
          %v2220 = vsel %vm1344, %v2198, 0.0
          %2221 = vadd.xlane.f32.xlu0 %v2220
          %v2222 = vpop.xlane.xlu0 %2221
          %v2223 = vsel %vm1344, %v2199, 0.0
          %2224 = vadd.xlane.f32.xlu0 %v2223
          %v2225 = vpop.xlane.xlu0 %2224
          %v2226 = vsel %vm1344, %v2200, 0.0
          %2227 = vadd.xlane.f32.xlu0 %v2226
          %v2228 = vpop.xlane.xlu0 %2227
          %v2229 = vsel %vm1344, %v2201, 0.0
          %2230 = vadd.xlane.f32.xlu0 %v2229
          %v2231 = vpop.xlane.xlu0 %2230
          %v2232 = vsel %vm1344, %v2202, 0.0
          %2233 = vadd.xlane.f32.xlu0 %v2232
          %v2234 = vpop.xlane.xlu0 %2233
          %v2235 = vsel %vm1344, %v2203, 0.0
          %2236 = vadd.xlane.f32.xlu0 %v2235
          %v2237 = vpop.xlane.xlu0 %2236
          %v2238 = vsel %vm1344, %v2204, 0.0
          %2239 = vadd.xlane.f32.xlu0 %v2238
          %v2240 = vpop.xlane.xlu0 %2239
          %v2241 = vsel %vm1344, %v2205, 0.0
          %2242 = vadd.xlane.f32.xlu0 %v2241
          %v2243 = vpop.xlane.xlu0 %2242
          %v2244 = vsel %vm1344, %v2206, 0.0
          %2245 = vadd.xlane.f32.xlu0 %v2244
          %v2246 = vpop.xlane.xlu0 %2245
          %v2247 = vsel %vm1344, %v2207, 0.0
          %2248 = vadd.xlane.f32.xlu0 %v2247
          %v2249 = vpop.xlane.xlu0 %2248
          %v2250 = vsel %vm1344, %v2208, 0.0
          %2251 = vadd.xlane.f32.xlu0 %v2250
          %v2252 = vpop.xlane.xlu0 %2251
          %v2253 = vsel %vm1344, %v2209, 0.0
          %2254 = vadd.xlane.f32.xlu0 %v2253
          %v2255 = vpop.xlane.xlu0 %2254
          %v2256 = vsel %vm1344, %v2210, 0.0
          %2257 = vadd.xlane.f32.xlu0 %v2256
          %v2258 = vpop.xlane.xlu0 %2257
          %v2259 = vsel %vm1344, %v2211, 0.0
          %2260 = vadd.xlane.f32.xlu0 %v2259
          %v2261 = vpop.xlane.xlu0 %2260
          %v2262 = vmul.f32 %v2216, %v1879
          %v2263 = vmul.f32 %v2219, %v1879
          %v2264 = vmul.f32 %v2222, %v1879
          %v2265 = vmul.f32 %v2225, %v1879
          %v2266 = vmul.f32 %v2228, %v1879
          %v2267 = vmul.f32 %v2231, %v1879
          %v2268 = vmul.f32 %v2234, %v1879
          %v2269 = vmul.f32 %v2237, %v1879
          %v2270 = vmul.f32 %v2240, %v1879
          %v2271 = vmul.f32 %v2243, %v1879
          %v2272 = vmul.f32 %v2246, %v1879
          %v2273 = vmul.f32 %v2249, %v1879
          %v2274 = vmul.f32 %v2252, %v1879
          %v2275 = vmul.f32 %v2255, %v1879
          %v2276 = vmul.f32 %v2258, %v1879
          %v2277 = vmul.f32 %v2261, %v1879
          %v2278 = vsub.f32 %v2196, %v2262
          %v2279 = vsub.f32 %v2197, %v2263
          %v2280 = vsub.f32 %v2198, %v2264
          %v2281 = vsub.f32 %v2199, %v2265
          %v2282 = vsub.f32 %v2200, %v2266
          %v2283 = vsub.f32 %v2201, %v2267
          %v2284 = vsub.f32 %v2202, %v2268
          %v2285 = vsub.f32 %v2203, %v2269
          %v2286 = vsub.f32 %v2204, %v2270
          %v2287 = vsub.f32 %v2205, %v2271
          %v2288 = vsub.f32 %v2206, %v2272
          %v2289 = vsub.f32 %v2207, %v2273
          %v2290 = vsub.f32 %v2208, %v2274
          %v2291 = vsub.f32 %v2209, %v2275
          %v2292 = vsub.f32 %v2210, %v2276
          %v2293 = vsub.f32 %v2211, %v2277
          %v2294 = vmul.f32 %v2278, %v2278
          %v2295 = vmul.f32 %v2279, %v2279
          %v2296 = vmul.f32 %v2280, %v2280
          %v2297 = vmul.f32 %v2281, %v2281
          %v2298 = vmul.f32 %v2282, %v2282
          %v2299 = vmul.f32 %v2283, %v2283
          %v2300 = vmul.f32 %v2284, %v2284
          %v2301 = vmul.f32 %v2285, %v2285
          %v2302 = vmul.f32 %v2286, %v2286
          %v2303 = vmul.f32 %v2287, %v2287
          %v2304 = vmul.f32 %v2288, %v2288
          %v2305 = vmul.f32 %v2289, %v2289
          %v2306 = vmul.f32 %v2290, %v2290
          %v2307 = vmul.f32 %v2291, %v2291
          %v2308 = vmul.f32 %v2292, %v2292
          %v2309 = vmul.f32 %v2293, %v2293
          %v2310 = vsel %vm1344, %v2294, 0.0
          %2311 = vadd.xlane.f32.xlu0 %v2310
          %v2312 = vpop.xlane.xlu0 %2311
          %v2313 = vsel %vm1344, %v2295, 0.0
          %2314 = vadd.xlane.f32.xlu0 %v2313
          %v2315 = vpop.xlane.xlu0 %2314
          %v2316 = vsel %vm1344, %v2296, 0.0
          %2317 = vadd.xlane.f32.xlu0 %v2316
          %v2318 = vpop.xlane.xlu0 %2317
          %v2319 = vsel %vm1344, %v2297, 0.0
          %2320 = vadd.xlane.f32.xlu0 %v2319
          %v2321 = vpop.xlane.xlu0 %2320
          %v2322 = vsel %vm1344, %v2298, 0.0
          %2323 = vadd.xlane.f32.xlu0 %v2322
          %v2324 = vpop.xlane.xlu0 %2323
          %v2325 = vsel %vm1344, %v2299, 0.0
          %2326 = vadd.xlane.f32.xlu0 %v2325
          %v2327 = vpop.xlane.xlu0 %2326
          %v2328 = vsel %vm1344, %v2300, 0.0
          %2329 = vadd.xlane.f32.xlu0 %v2328
          %v2330 = vpop.xlane.xlu0 %2329
          %v2331 = vsel %vm1344, %v2301, 0.0
          %2332 = vadd.xlane.f32.xlu0 %v2331
          %v2333 = vpop.xlane.xlu0 %2332
          %v2334 = vsel %vm1344, %v2302, 0.0
          %2335 = vadd.xlane.f32.xlu0 %v2334
          %v2336 = vpop.xlane.xlu0 %2335
          %v2337 = vsel %vm1344, %v2303, 0.0
          %2338 = vadd.xlane.f32.xlu0 %v2337
          %v2339 = vpop.xlane.xlu0 %2338
          %v2340 = vsel %vm1344, %v2304, 0.0
          %2341 = vadd.xlane.f32.xlu0 %v2340
          %v2342 = vpop.xlane.xlu0 %2341
          %v2343 = vsel %vm1344, %v2305, 0.0
          %2344 = vadd.xlane.f32.xlu0 %v2343
          %v2345 = vpop.xlane.xlu0 %2344
          %v2346 = vsel %vm1344, %v2306, 0.0
          %2347 = vadd.xlane.f32.xlu0 %v2346
          %v2348 = vpop.xlane.xlu0 %2347
          %v2349 = vsel %vm1344, %v2307, 0.0
          %2350 = vadd.xlane.f32.xlu0 %v2349
          %v2351 = vpop.xlane.xlu0 %2350
          %v2352 = vsel %vm1344, %v2308, 0.0
          %2353 = vadd.xlane.f32.xlu0 %v2352
          %v2354 = vpop.xlane.xlu0 %2353
          %v2355 = vsel %vm1344, %v2309, 0.0
          %2356 = vadd.xlane.f32.xlu0 %v2355
          %v2357 = vpop.xlane.xlu0 %2356
          %v2358 = vmul.f32 %v2312, %v1879
          %v2359 = vmul.f32 %v2315, %v1879
          %v2360 = vmul.f32 %v2318, %v1879
          %v2361 = vmul.f32 %v2321, %v1879
          %v2362 = vmul.f32 %v2324, %v1879
          %v2363 = vmul.f32 %v2327, %v1879
          %v2364 = vmul.f32 %v2330, %v1879
          %v2365 = vmul.f32 %v2333, %v1879
          %v2366 = vmul.f32 %v2336, %v1879
          %v2367 = vmul.f32 %v2339, %v1879
          %v2368 = vmul.f32 %v2342, %v1879
          %v2369 = vmul.f32 %v2345, %v1879
          %v2370 = vmul.f32 %v2348, %v1879
          %v2371 = vmul.f32 %v2351, %v1879
          %v2372 = vmul.f32 %v2354, %v1879
          %v2373 = vmul.f32 %v2357, %v1879
          %v2374 = vadd.f32 %v2358, 1e-05
          %v2375 = vadd.f32 %v2359, 1e-05
          %v2376 = vadd.f32 %v2360, 1e-05
          %v2377 = vadd.f32 %v2361, 1e-05
          %v2378 = vadd.f32 %v2362, 1e-05
          %v2379 = vadd.f32 %v2363, 1e-05
          %v2380 = vadd.f32 %v2364, 1e-05
          %v2381 = vadd.f32 %v2365, 1e-05
          %v2382 = vadd.f32 %v2366, 1e-05
          %v2383 = vadd.f32 %v2367, 1e-05
          %v2384 = vadd.f32 %v2368, 1e-05
          %v2385 = vadd.f32 %v2369, 1e-05
          %v2386 = vadd.f32 %v2370, 1e-05
          %v2387 = vadd.f32 %v2371, 1e-05
          %v2388 = vadd.f32 %v2372, 1e-05
          %v2389 = vadd.f32 %v2373, 1e-05
          %v2390 = vrsqrt.pop %v2374
          %v2391 = vrsqrt.pop %v2375
          %v2392 = vrsqrt.pop %v2376
          %v2393 = vrsqrt.pop %v2377
          %v2394 = vrsqrt.pop %v2378
          %v2395 = vrsqrt.pop %v2379
          %v2396 = vrsqrt.pop %v2380
          %v2397 = vrsqrt.pop %v2381
          %v2398 = vrsqrt.pop %v2382
          %v2399 = vrsqrt.pop %v2383
          %v2400 = vrsqrt.pop %v2384
          %v2401 = vrsqrt.pop %v2385
          %v2402 = vrsqrt.pop %v2386
          %v2403 = vrsqrt.pop %v2387
          %v2404 = vrsqrt.pop %v2388
          %v2405 = vrsqrt.pop %v2389
          %v2406 = vmul.f32 %v2278, %v2390
          %v2407 = vmul.f32 %v2279, %v2391
          %v2408 = vmul.f32 %v2280, %v2392
          %v2409 = vmul.f32 %v2281, %v2393
          %v2410 = vmul.f32 %v2282, %v2394
          %v2411 = vmul.f32 %v2283, %v2395
          %v2412 = vmul.f32 %v2284, %v2396
          %v2413 = vmul.f32 %v2285, %v2397
          %v2414 = vmul.f32 %v2286, %v2398
          %v2415 = vmul.f32 %v2287, %v2399
          %v2416 = vmul.f32 %v2288, %v2400
          %v2417 = vmul.f32 %v2289, %v2401
          %v2418 = vmul.f32 %v2290, %v2402
          %v2419 = vmul.f32 %v2291, %v2403
          %v2420 = vmul.f32 %v2292, %v2404
          %v2421 = vmul.f32 %v2293, %v2405
          %v2423 = vlaneseq
          %v2424 = vshrl.u32 %v2423, 7
          %v2425 = vsub.s32 0, %v2424
          %v2426 = vrot.slane %v2212, %v2425
          %v2428 = vmul.f32 %v2406, %v2426
          %v2429 = vmul.f32 %v2407, %v2426
          %v2430 = vmul.f32 %v2408, %v2426
          %v2431 = vmul.f32 %v2409, %v2426
          %v2432 = vmul.f32 %v2410, %v2426
          %v2433 = vmul.f32 %v2411, %v2426
          %v2434 = vmul.f32 %v2412, %v2426
          %v2435 = vmul.f32 %v2413, %v2426
          %v2436 = vmul.f32 %v2414, %v2426
          %v2437 = vmul.f32 %v2415, %v2426
          %v2438 = vmul.f32 %v2416, %v2426
          %v2439 = vmul.f32 %v2417, %v2426
          %v2440 = vmul.f32 %v2418, %v2426
          %v2441 = vmul.f32 %v2419, %v2426
          %v2442 = vmul.f32 %v2420, %v2426
          %v2443 = vmul.f32 %v2421, %v2426
          %v2445 = vlaneseq
          %v2446 = vshrl.u32 %v2445, 7
          %v2447 = vsub.s32 0, %v2446
          %v2448 = vrot.slane %v2213, %v2447
          %v2450 = vadd.f32 %v2428, %v2448
          %v2451 = vadd.f32 %v2429, %v2448
          %v2452 = vadd.f32 %v2430, %v2448
          %v2453 = vadd.f32 %v2431, %v2448
          %v2454 = vadd.f32 %v2432, %v2448
          %v2455 = vadd.f32 %v2433, %v2448
          %v2456 = vadd.f32 %v2434, %v2448
          %v2457 = vadd.f32 %v2435, %v2448
          %v2458 = vadd.f32 %v2436, %v2448
          %v2459 = vadd.f32 %v2437, %v2448
          %v2460 = vadd.f32 %v2438, %v2448
          %v2461 = vadd.f32 %v2439, %v2448
          %v2462 = vadd.f32 %v2440, %v2448
          %v2463 = vadd.f32 %v2441, %v2448
          %v2464 = vadd.f32 %v2442, %v2448
          %v2465 = vadd.f32 %v2443, %v2448
          %v2466 = vsel %vm1344, %v2450, 0.0
          %v2467 = vsel %vm1344, %v2451, 0.0
          %v2468 = vsel %vm1344, %v2452, 0.0
          %v2469 = vsel %vm1344, %v2453, 0.0
          %v2470 = vsel %vm1344, %v2454, 0.0
          %v2471 = vsel %vm1344, %v2455, 0.0
          %v2472 = vsel %vm1344, %v2456, 0.0
          %v2473 = vsel %vm1344, %v2457, 0.0
          %v2474 = vsel %vm1344, %v2458, 0.0
          %v2475 = vsel %vm1344, %v2459, 0.0
          %v2476 = vsel %vm1344, %v2460, 0.0
          %v2477 = vsel %vm1344, %v2461, 0.0
          %v2478 = vsel %vm1344, %v2462, 0.0
          %v2479 = vsel %vm1344, %v2463, 0.0
          %v2480 = vsel %vm1344, %v2464, 0.0
          %v2481 = vsel %vm1344, %v2465, 0.0
          %v2482 = vpack.c.bf16 %v2467, %v2466
          %v2483 = vpack.c.bf16 %v2469, %v2468
          %v2484 = vpack.c.bf16 %v2471, %v2470
          %v2485 = vpack.c.bf16 %v2473, %v2472
          %v2486 = vpack.c.bf16 %v2475, %v2474
          %v2487 = vpack.c.bf16 %v2477, %v2476
          %v2488 = vpack.c.bf16 %v2479, %v2478
          %v2489 = vpack.c.bf16 %v2481, %v2480
          %v2498 = vunpack.c.l.b16 %v2482
          %v2499 = vunpack.c.h.b16 %v2482
          %v2500 = vunpack.c.l.b16 %v2483
          %v2501 = vunpack.c.h.b16 %v2483
          %v2502 = vunpack.c.l.b16 %v2484
          %v2503 = vunpack.c.h.b16 %v2484
          %v2504 = vunpack.c.l.b16 %v2485
          %v2505 = vunpack.c.h.b16 %v2485
          %v2506 = vunpack.c.l.b16 %v2486
          %v2507 = vunpack.c.h.b16 %v2486
          %v2508 = vunpack.c.l.b16 %v2487
          %v2509 = vunpack.c.h.b16 %v2487
          %v2510 = vunpack.c.l.b16 %v2488
          %v2511 = vunpack.c.h.b16 %v2488
          %v2512 = vunpack.c.l.b16 %v2489
          %v2513 = vunpack.c.h.b16 %v2489
          %v2514 = vpack.c.b16 %v2498, %v2498
          %v2515 = vpack.c.b16 %v2499, %v2499
          %v2516 = vpack.c.b16 %v2500, %v2500
          %v2517 = vpack.c.b16 %v2501, %v2501
          %v2518 = vpack.c.b16 %v2502, %v2502
          %v2519 = vpack.c.b16 %v2503, %v2503
          %v2520 = vpack.c.b16 %v2504, %v2504
          %v2521 = vpack.c.b16 %v2505, %v2505
          %v2522 = vpack.c.b16 %v2506, %v2506
          %v2523 = vpack.c.b16 %v2507, %v2507
          %v2524 = vpack.c.b16 %v2508, %v2508
          %v2525 = vpack.c.b16 %v2509, %v2509
          %v2526 = vpack.c.b16 %v2510, %v2510
          %v2527 = vpack.c.b16 %v2511, %v2511
          %v2528 = vpack.c.b16 %v2512, %v2512
          %v2529 = vpack.c.b16 %v2513, %v2513
          %2546 = vst [vmem:[%s504] sm:$0xf] %v2514
          %2547 = vst [vmem:[%s504 + $0x4] sm:$0xf] %v2515
          %2548 = vst [vmem:[%s504 + $0x8] sm:$0xf] %v2516
          %2549 = vst [vmem:[%s504 + $0xc] sm:$0xf] %v2517
          %2550 = vst [vmem:[%s504 + $0x10] sm:$0xf] %v2518
          %2551 = vst [vmem:[%s504 + $0x14] sm:$0xf] %v2519
          %2552 = vst [vmem:[%s504 + $0x18] sm:$0xf] %v2520
          %2553 = vst [vmem:[%s504 + $0x1c] sm:$0xf] %v2521
          %2554 = vst [vmem:[%s504 + $0x20] sm:$0xf] %v2522
          %2555 = vst [vmem:[%s504 + $0x24] sm:$0xf] %v2523
          %2556 = vst [vmem:[%s504 + $0x28] sm:$0xf] %v2524
          %2557 = vst [vmem:[%s504 + $0x2c] sm:$0xf] %v2525
          %2558 = vst [vmem:[%s504 + $0x30] sm:$0xf] %v2526
          %2559 = vst [vmem:[%s504 + $0x34] sm:$0xf] %v2527
          %2560 = vst [vmem:[%s504 + $0x38] sm:$0xf] %v2528
          %2561 = vst [vmem:[%s504 + $0x3c] sm:$0xf] %v2529
        $region80: #{tpu_custom_call.1} parent=67 // pred_fallthru
          _
        %s2562 = sand.u32 %s318, 1
        %s2563 = scalar_lea.sflag [#allocation5], %s2562
        %s2564 = sand.u32 %s318, 1
        %s2565 = smul.addr %s2564, 64
        %s2566 = scalar_lea.vmem [#allocation6], %s2565
        // Predicated region
        $region81: #{tpu_custom_call.1} parent=67 // pred_check
          %p2567 = pneg %p328
        $region82: #{tpu_custom_call.1} parent=67 // pred_check_branch
          %2569 = sbr.rel (%p2567) target = $region84
        $region83: #{tpu_custom_call.1} parent=67 // pred_region
          %s2570 = smul.u32 16, %s33
          %s2572 = ssub.s32 1024, 1024
          %2573 = vsyncadd %s2563, %s2572
          %s2574 = smul.addr %s2570, 64
          %s2575 = scalar_lea.hbm %s12, %s2574
          %s2576 = sshll.u32 %s2566, 4
          %s2577 = int_to_ptr.vmem [resolvable:$true] %s2576
          %2582 = dma.vmem_to_hbm [thread:$0]  %s2577, 1024, %s2575, %s2563, 64, 64, 4
        $region84: #{tpu_custom_call.1} parent=67 // pred_fallthru
          _
      $region68: #{tpu_custom_call.1} parent=5 // pred_fallthru
        _
      %p2583 = scmp.le.s32.totalorder 2, %s24
      // Predicated region
      $region85: #{tpu_custom_call.1} parent=5 // pred_check
        %p2584 = pneg %p2583
      $region86: #{tpu_custom_call.1} parent=5 // pred_check_branch
        %2586 = sbr.rel (%p2584) target = $region88
      $region87: #{tpu_custom_call.1} parent=5 // pred_region
        %s2587 = ssub.s32 %s24, 2
        // Predicated region
        $region89: #{tpu_custom_call.1} parent=87 // pred_check
          %p2588 = pneg %p334
        $region90: #{tpu_custom_call.1} parent=87 // pred_check_branch
          %2590 = sbr.rel (%p2588) target = $region92
        $region91: #{tpu_custom_call.1} parent=87 // pred_region
          %s2591 = sand.u32 %s319, 1
          %s2592 = scalar_lea.sflag [#allocation5], %s2591
          %s2593 = sand.u32 %s319, 1
          %s2594 = smul.addr %s2593, 64
          %s2595 = scalar_lea.vmem [#allocation6], %s2594
          %2596 = dma.done %s2592, 1024
        $region92: #{tpu_custom_call.1} parent=87 // pred_fallthru
          _
      $region88: #{tpu_custom_call.1} parent=5 // pred_fallthru
        _
    $region6: #{tpu_custom_call.1} parent=1 // loop_footer
      %s28 = sadd.s32 1, %s24
    $region7: #{tpu_custom_call.1} parent=1 // loop_footer_branch
      %23 = sbr.rel target = $region3
    $region8: #{tpu_custom_call.1} parent=1 // loop_exit
      _
    %2597 = vsyncpa [#allocation4], 1
    %s2598 = scalar_lea.sflag [#allocation4], 1
    %2599 = vsyncpa %s2598, 1
    %2600 = vsyncpa [#allocation5], 1
    %s2601 = scalar_lea.sflag [#allocation5], 1
    %2602 = vsyncpa %s2601, 1

</llo_original>
